<compile_context>
chip_gen: v5e
topology: v5e:2x2
jax: 0.10.0
libtpu: 0.0.40
codegen_flags: <defaults>
</compile_context>

<pallas_src>
import functools
import math

import jax
import jax.numpy as jnp
from jax.experimental import pallas as pl
from jax.experimental.pallas import tpu as pltpu

BN_EPS = 1e-5


def _backbone_kernel(x_ref, w1_ref, w2_ref, w3_ref, w4_ref,
                     gb1_ref, gb2_ref, gb3_ref, gb4_ref,
                     p_ref, g_ref, *, batch, npoints):
    rows = batch * npoints
    inv_n = 1.0 / float(rows)

    x = x_ref[0]                                   # (B*N, 3), f32

    def conv_bn_relu(h_in, w_ref, gb_ref):
        # 1x1 conv == matmul contracting channels. Weight is (C_out, C_in);
        # contract dim 1 of both operands (h @ W.T) -> no transposes anywhere.
        h = jax.lax.dot_general(
            h_in, w_ref[...],
            dimension_numbers=(((1,), (1,)), ((), ())),
            preferred_element_type=jnp.float32)
        # BatchNorm1d training-mode stats over all B*N points, per channel.
        # Two independent reductions; biased variance = E[h^2] - mean^2.
        mean = jnp.sum(h, axis=0, keepdims=True) * inv_n
        mean_sq = jnp.sum(h * h, axis=0, keepdims=True) * inv_n
        var = jnp.maximum(mean_sq - mean * mean, 0.0)
        gamma = gb_ref[0:1, :]
        beta = gb_ref[1:2, :]
        # Fold normalize + affine into one per-channel scale/shift.
        scale = gamma * jax.lax.rsqrt(var + BN_EPS)
        shift = beta - mean * scale
        return jnp.maximum(h * scale + shift, 0.0)

    h = conv_bn_relu(x, w1_ref, gb1_ref)           # (B*N, 64)
    h = conv_bn_relu(h, w2_ref, gb2_ref)           # (B*N, 64)
    h = conv_bn_relu(h, w3_ref, gb3_ref)           # (B*N, 128)
    p = conv_bn_relu(h, w4_ref, gb4_ref)           # (B*N, D)

    # Lane-dense per-point feature slab (channels on lanes).
    p_ref[0] = p.astype(p_ref.dtype)

    # Global feature: max over points, per batch element / channel.
    # One vectorized XLU reduce + one unmasked store (no per-row loop).
    d = p.shape[-1]
    g_ref[0] = jnp.max(p.reshape(batch, npoints, d), axis=1).astype(g_ref.dtype)


def maml_pointnet_backbone_tasks(x, w1, w2, w3, w4,
                                 gamma1, beta1, gamma2, beta2,
                                 gamma3, beta3, gamma4, beta4):
    """Batched-task forward.

    x : (T, B, N, 3)   -- T independent MAML tasks, each a (B, N, 3) point cloud.
    wI: (C_out, C_in, 1) conv1d weights (kernel_size=1, no bias).
    gammaI/betaI: (C,) BatchNorm affine parameters (or the MAML fast weights).

    Returns (xyz, p_fea, g_fea) with PyTorch layouts per task:
      xyz (T, B, N, 3), p_fea (T, B, Out_dims, N), g_fea (T, B, Out_dims).
    """
    T, B, N, c_in = x.shape
    assert c_in == 3
    H1 = w1.shape[0]
    H2 = w2.shape[0]
    H3 = w3.shape[0]
    D = w4.shape[0]

    # Metadata-only reshapes (no data movement): squeeze the k=1 conv dim,
    # flatten points into rows, pack (gamma, beta) per layer into one input.
    x_flat = x.reshape(T, B * N, 3)
    w1m = w1.reshape(H1, 3)
    w2m = w2.reshape(H2, H1)
    w3m = w3.reshape(H3, H2)
    w4m = w4.reshape(D, H3)
    gb1 = jnp.stack([gamma1, beta1])               # (2, H1)
    gb2 = jnp.stack([gamma2, beta2])               # (2, H2)
    gb3 = jnp.stack([gamma3, beta3])               # (2, H3)
    gb4 = jnp.stack([gamma4, beta4])               # (2, D)

    kernel = functools.partial(_backbone_kernel, batch=B, npoints=N)

    const2d = lambda shape: pl.BlockSpec(shape, lambda t: (0, 0))

    p_flat, g_fea = pl.pallas_call(
        kernel,
        out_shape=(jax.ShapeDtypeStruct((T, B * N, D), jnp.float32),
                   jax.ShapeDtypeStruct((T, B, D), jnp.float32)),
        grid=(T,),
        in_specs=[
            pl.BlockSpec((1, B * N, 3), lambda t: (t, 0, 0)),
            const2d((H1, 3)),
            const2d((H2, H1)),
            const2d((H3, H2)),
            const2d((D, H3)),
            const2d((2, H1)),
            const2d((2, H2)),
            const2d((2, H3)),
            const2d((2, D)),
        ],
        out_specs=(pl.BlockSpec((1, B * N, D), lambda t: (t, 0, 0)),
                   pl.BlockSpec((1, B, D), lambda t: (t, 0, 0))),
        compiler_params=pltpu.CompilerParams(
            dimension_semantics=("parallel",)),
    )(x_flat, w1m, w2m, w3m, w4m, gb1, gb2, gb3, gb4)

    # Layout plumbing only: restore PyTorch's channels-first (B, C, N) p_fea.
    p_fea = jnp.swapaxes(p_flat.reshape(T, B, N, D), 2, 3)   # (T, B, D, N)
    xyz = x
    return xyz, p_fea, g_fea


def maml_pointnet_backbone(x, *params):
    """Single-task forward matching the module signature: x is (B, N, 3)."""
    _, p_fea, g_fea = maml_pointnet_backbone_tasks(x[None], *params)
    return x, p_fea[0], g_fea[0]


# ---------------------------------------------------------------------------
# Pure-JAX reference following the PyTorch op order exactly.
# ---------------------------------------------------------------------------
def reference_forward(x, w1, w2, w3, w4,
                      gamma1, beta1, gamma2, beta2,
                      gamma3, beta3, gamma4, beta4):
    def conv_bn_relu(h, w, gamma, beta):
        # h: (B, C_in, N); w: (C_out, C_in, 1)
        y = jnp.einsum('oc,bcn->bon', w[..., 0], h,
                       precision=jax.lax.Precision.HIGHEST)
        mean = y.mean(axis=(0, 2), keepdims=True)
        var = ((y - mean) ** 2).mean(axis=(0, 2), keepdims=True)
        y = (y - mean) / jnp.sqrt(var + BN_EPS)
        y = y * gamma[None, :, None] + beta[None, :, None]
        return jnp.maximum(y, 0.0)

    xt = jnp.swapaxes(x, 1, 2)                     # (B, 3, N)
    h = conv_bn_relu(xt, w1, gamma1, beta1)
    h = conv_bn_relu(h, w2, gamma2, beta2)
    h = conv_bn_relu(h, w3, gamma3, beta3)
    p_fea = conv_bn_relu(h, w4, gamma4, beta4)     # (B, D, N)
    g_fea = p_fea.max(axis=-1)                     # (B, D)
    return x, p_fea, g_fea


if __name__ == "__main__":
    T, B, N = 2, 2, 64          # tasks, batch per task, points per cloud
    OUT_DIMS = 128

    key = jax.random.PRNGKey(0)
    keys = jax.random.split(key, 13)

    x = jax.random.normal(keys[0], (T, B, N, 3), dtype=jnp.float32)

    def conv_w(k, c_out, c_in):                    # conv1d (k=1, bias=False)
        bound = 1.0 / math.sqrt(c_in)
        return jax.random.uniform(k, (c_out, c_in, 1), jnp.float32, -bound, bound)

    w1 = conv_w(keys[1], 64, 3)
    w2 = conv_w(keys[2], 64, 64)
    w3 = conv_w(keys[3], 128, 64)
    w4 = conv_w(keys[4], OUT_DIMS, 128)

    def bn_params(kg, kb, c):                      # random affine (exercise the math)
        gamma = jax.random.uniform(kg, (c,), jnp.float32, 0.5, 1.5)
        beta = 0.1 * jax.random.normal(kb, (c,), jnp.float32)
        return gamma, beta

    gamma1, beta1 = bn_params(keys[5], keys[6], 64)
    gamma2, beta2 = bn_params(keys[7], keys[8], 64)
    gamma3, beta3 = bn_params(keys[9], keys[10], 128)
    gamma4, beta4 = bn_params(keys[11], keys[12], OUT_DIMS)

    params = (w1, w2, w3, w4, gamma1, beta1, gamma2, beta2,
              gamma3, beta3, gamma4, beta4)

    # Batched-task Pallas forward (one pallas_call, grid over tasks).
    xyz, p_fea, g_fea = maml_pointnet_backbone_tasks(x, *params)
    xyz, p_fea, g_fea = jax.block_until_ready((xyz, p_fea, g_fea))

    assert xyz.shape == (T, B, N, 3)
    assert p_fea.shape == (T, B, OUT_DIMS, N)
    assert g_fea.shape == (T, B, OUT_DIMS)
    assert bool(jnp.array_equal(xyz, x))

    for t in range(T):
        _, p_ref, g_ref = reference_forward(x[t], *params)
        assert bool(jnp.allclose(p_fea[t], p_ref, atol=1e-4, rtol=1e-3)), \
            f"p_fea mismatch on task {t}"
        assert bool(jnp.allclose(g_fea[t], g_ref, atol=1e-4, rtol=1e-3)), \
            f"g_fea mismatch on task {t}"

    # Single-task path (module's native (B, N, 3) signature).
    xyz1, p1, gf1 = maml_pointnet_backbone(x[0], *params)
    xyz1, p1, gf1 = jax.block_until_ready((xyz1, p1, gf1))
    assert p1.shape == (B, OUT_DIMS, N) and gf1.shape == (B, OUT_DIMS)
    assert bool(jnp.allclose(p1, p_fea[0], atol=1e-5, rtol=1e-5))
    assert bool(jnp.allclose(gf1, g_fea[0], atol=1e-5, rtol=1e-5))

    print("KERNEL_OK")
</pallas_src>

<mosaic_0001>
module attributes {stable_mosaic.version = 11 : i64} {
  func.func @_backbone_kernel(%arg0: i32, %arg1: memref<1x128x3xf32, #tpu.memory_space<vmem>>, %arg2: memref<64x3xf32, #tpu.memory_space<vmem>>, %arg3: memref<64x64xf32, #tpu.memory_space<vmem>>, %arg4: memref<128x64xf32, #tpu.memory_space<vmem>>, %arg5: memref<128x128xf32, #tpu.memory_space<vmem>>, %arg6: memref<2x64xf32, #tpu.memory_space<vmem>>, %arg7: memref<2x64xf32, #tpu.memory_space<vmem>>, %arg8: memref<2x128xf32, #tpu.memory_space<vmem>>, %arg9: memref<2x128xf32, #tpu.memory_space<vmem>>, %arg10: memref<1x128x128xf32, #tpu.memory_space<vmem>>, %arg11: memref<1x2x128xf32, #tpu.memory_space<vmem>>) attributes {dimension_semantics = [#tpu.dimension_semantics<parallel>], iteration_bounds = array<i64: 2>, scalar_prefetch = 0 : i64, scratch_operands = 0 : i64, tpu.core_type = #tpu.core_type<tc>, window_params = [{transform_indices = @transform_0, window_bounds = array<i64: 1, 128, 3>}, {pipeline_mode = #tpu.pipeline_mode<synchronous>, transform_indices = @transform_1, window_bounds = array<i64: 64, 3>}, {pipeline_mode = #tpu.pipeline_mode<synchronous>, transform_indices = @transform_2, window_bounds = array<i64: 64, 64>}, {pipeline_mode = #tpu.pipeline_mode<synchronous>, transform_indices = @transform_3, window_bounds = array<i64: 128, 64>}, {pipeline_mode = #tpu.pipeline_mode<synchronous>, transform_indices = @transform_4, window_bounds = array<i64: 128, 128>}, {pipeline_mode = #tpu.pipeline_mode<synchronous>, transform_indices = @transform_5, window_bounds = array<i64: 2, 64>}, {pipeline_mode = #tpu.pipeline_mode<synchronous>, transform_indices = @transform_6, window_bounds = array<i64: 2, 64>}, {pipeline_mode = #tpu.pipeline_mode<synchronous>, transform_indices = @transform_7, window_bounds = array<i64: 2, 128>}, {pipeline_mode = #tpu.pipeline_mode<synchronous>, transform_indices = @transform_8, window_bounds = array<i64: 2, 128>}, {transform_indices = @transform_9, window_bounds = array<i64: 1, 128, 128>}, {transform_indices = @transform_10, window_bounds = array<i64: 1, 2, 128>}]} {
    %c0 = arith.constant 0 : index
    %c0_0 = arith.constant 0 : index
    %c0_1 = arith.constant 0 : index
    %0 = vector.load %arg1[%c0, %c0_0, %c0_1] : memref<1x128x3xf32, #tpu.memory_space<vmem>>, vector<1x128x3xf32>
    %1 = vector.shape_cast %0 : vector<1x128x3xf32> to vector<128x3xf32>
    %c0_2 = arith.constant 0 : index
    %c0_3 = arith.constant 0 : index
    %2 = vector.load %arg2[%c0_2, %c0_3] : memref<64x3xf32, #tpu.memory_space<vmem>>, vector<64x3xf32>
    %cst = arith.constant dense<0.000000e+00> : vector<128x64xf32>
    %3 = tpu.matmul %1, %2, %cst {dimension_numbers = #tpu.dot_dimension_numbers<[1], [1], [0], [0], [0, 0, 1, 0], [], []>} : vector<128x3xf32>, vector<64x3xf32>, vector<128x64xf32> -> vector<128x64xf32>
    %cst_4 = arith.constant dense<0.000000e+00> : vector<64xf32>
    %4 = vector.multi_reduction <add>, %3, %cst_4 [0] : vector<128x64xf32> to vector<64xf32>
    %5 = vector.shape_cast %4 : vector<64xf32> to vector<1x64xf32>
    %cst_5 = arith.constant 7.812500e-03 : f32
    %6 = vector.broadcast %cst_5 : f32 to vector<1x64xf32>
    %7 = arith.mulf %5, %6 : vector<1x64xf32>
    %8 = arith.mulf %3, %3 : vector<128x64xf32>
    %cst_6 = arith.constant dense<0.000000e+00> : vector<64xf32>
    %9 = vector.multi_reduction <add>, %8, %cst_6 [0] : vector<128x64xf32> to vector<64xf32>
    %10 = vector.shape_cast %9 : vector<64xf32> to vector<1x64xf32>
    %cst_7 = arith.constant 7.812500e-03 : f32
    %11 = vector.broadcast %cst_7 : f32 to vector<1x64xf32>
    %12 = arith.mulf %10, %11 : vector<1x64xf32>
    %13 = arith.mulf %7, %7 : vector<1x64xf32>
    %14 = arith.subf %12, %13 : vector<1x64xf32>
    %cst_8 = arith.constant 0.000000e+00 : f32
    %15 = vector.broadcast %cst_8 : f32 to vector<1x64xf32>
    %16 = arith.maximumf %14, %15 : vector<1x64xf32>
    %c0_9 = arith.constant 0 : index
    %c0_10 = arith.constant 0 : index
    %17 = vector.load %arg6[%c0_9, %c0_10] : memref<2x64xf32, #tpu.memory_space<vmem>>, vector<1x64xf32>
    %c1 = arith.constant 1 : index
    %c0_11 = arith.constant 0 : index
    %18 = vector.load %arg6[%c1, %c0_11] : memref<2x64xf32, #tpu.memory_space<vmem>>, vector<1x64xf32>
    %cst_12 = arith.constant 9.99999974E-6 : f32
    %19 = vector.broadcast %cst_12 : f32 to vector<1x64xf32>
    %20 = arith.addf %16, %19 : vector<1x64xf32>
    %21 = math.rsqrt %20 : vector<1x64xf32>
    %22 = arith.mulf %17, %21 : vector<1x64xf32>
    %23 = arith.mulf %7, %22 : vector<1x64xf32>
    %24 = arith.subf %18, %23 : vector<1x64xf32>
    %25 = vector.broadcast %22 : vector<1x64xf32> to vector<128x64xf32>
    %26 = arith.mulf %3, %25 : vector<128x64xf32>
    %27 = vector.broadcast %24 : vector<1x64xf32> to vector<128x64xf32>
    %28 = arith.addf %26, %27 : vector<128x64xf32>
    %cst_13 = arith.constant 0.000000e+00 : f32
    %29 = vector.broadcast %cst_13 : f32 to vector<128x64xf32>
    %30 = arith.maximumf %28, %29 : vector<128x64xf32>
    %c0_14 = arith.constant 0 : index
    %c0_15 = arith.constant 0 : index
    %31 = vector.load %arg3[%c0_14, %c0_15] : memref<64x64xf32, #tpu.memory_space<vmem>>, vector<64x64xf32>
    %cst_16 = arith.constant dense<0.000000e+00> : vector<128x64xf32>
    %32 = tpu.matmul %30, %31, %cst_16 {dimension_numbers = #tpu.dot_dimension_numbers<[1], [1], [0], [0], [0, 0, 1, 0], [], []>} : vector<128x64xf32>, vector<64x64xf32>, vector<128x64xf32> -> vector<128x64xf32>
    %cst_17 = arith.constant dense<0.000000e+00> : vector<64xf32>
    %33 = vector.multi_reduction <add>, %32, %cst_17 [0] : vector<128x64xf32> to vector<64xf32>
    %34 = vector.shape_cast %33 : vector<64xf32> to vector<1x64xf32>
    %cst_18 = arith.constant 7.812500e-03 : f32
    %35 = vector.broadcast %cst_18 : f32 to vector<1x64xf32>
    %36 = arith.mulf %34, %35 : vector<1x64xf32>
    %37 = arith.mulf %32, %32 : vector<128x64xf32>
    %cst_19 = arith.constant dense<0.000000e+00> : vector<64xf32>
    %38 = vector.multi_reduction <add>, %37, %cst_19 [0] : vector<128x64xf32> to vector<64xf32>
    %39 = vector.shape_cast %38 : vector<64xf32> to vector<1x64xf32>
    %cst_20 = arith.constant 7.812500e-03 : f32
    %40 = vector.broadcast %cst_20 : f32 to vector<1x64xf32>
    %41 = arith.mulf %39, %40 : vector<1x64xf32>
    %42 = arith.mulf %36, %36 : vector<1x64xf32>
    %43 = arith.subf %41, %42 : vector<1x64xf32>
    %cst_21 = arith.constant 0.000000e+00 : f32
    %44 = vector.broadcast %cst_21 : f32 to vector<1x64xf32>
    %45 = arith.maximumf %43, %44 : vector<1x64xf32>
    %c0_22 = arith.constant 0 : index
    %c0_23 = arith.constant 0 : index
    %46 = vector.load %arg7[%c0_22, %c0_23] : memref<2x64xf32, #tpu.memory_space<vmem>>, vector<1x64xf32>
    %c1_24 = arith.constant 1 : index
    %c0_25 = arith.constant 0 : index
    %47 = vector.load %arg7[%c1_24, %c0_25] : memref<2x64xf32, #tpu.memory_space<vmem>>, vector<1x64xf32>
    %cst_26 = arith.constant 9.99999974E-6 : f32
    %48 = vector.broadcast %cst_26 : f32 to vector<1x64xf32>
    %49 = arith.addf %45, %48 : vector<1x64xf32>
    %50 = math.rsqrt %49 : vector<1x64xf32>
    %51 = arith.mulf %46, %50 : vector<1x64xf32>
    %52 = arith.mulf %36, %51 : vector<1x64xf32>
    %53 = arith.subf %47, %52 : vector<1x64xf32>
    %54 = vector.broadcast %51 : vector<1x64xf32> to vector<128x64xf32>
    %55 = arith.mulf %32, %54 : vector<128x64xf32>
    %56 = vector.broadcast %53 : vector<1x64xf32> to vector<128x64xf32>
    %57 = arith.addf %55, %56 : vector<128x64xf32>
    %cst_27 = arith.constant 0.000000e+00 : f32
    %58 = vector.broadcast %cst_27 : f32 to vector<128x64xf32>
    %59 = arith.maximumf %57, %58 : vector<128x64xf32>
    %c0_28 = arith.constant 0 : index
    %c0_29 = arith.constant 0 : index
    %60 = vector.load %arg4[%c0_28, %c0_29] : memref<128x64xf32, #tpu.memory_space<vmem>>, vector<128x64xf32>
    %cst_30 = arith.constant dense<0.000000e+00> : vector<128x128xf32>
    %61 = tpu.matmul %59, %60, %cst_30 {dimension_numbers = #tpu.dot_dimension_numbers<[1], [1], [0], [0], [0, 0, 1, 0], [], []>} : vector<128x64xf32>, vector<128x64xf32>, vector<128x128xf32> -> vector<128x128xf32>
    %cst_31 = arith.constant dense<0.000000e+00> : vector<128xf32>
    %62 = vector.multi_reduction <add>, %61, %cst_31 [0] : vector<128x128xf32> to vector<128xf32>
    %63 = vector.shape_cast %62 : vector<128xf32> to vector<1x128xf32>
    %cst_32 = arith.constant 7.812500e-03 : f32
    %64 = vector.broadcast %cst_32 : f32 to vector<1x128xf32>
    %65 = arith.mulf %63, %64 : vector<1x128xf32>
    %66 = arith.mulf %61, %61 : vector<128x128xf32>
    %cst_33 = arith.constant dense<0.000000e+00> : vector<128xf32>
    %67 = vector.multi_reduction <add>, %66, %cst_33 [0] : vector<128x128xf32> to vector<128xf32>
    %68 = vector.shape_cast %67 : vector<128xf32> to vector<1x128xf32>
    %cst_34 = arith.constant 7.812500e-03 : f32
    %69 = vector.broadcast %cst_34 : f32 to vector<1x128xf32>
    %70 = arith.mulf %68, %69 : vector<1x128xf32>
    %71 = arith.mulf %65, %65 : vector<1x128xf32>
    %72 = arith.subf %70, %71 : vector<1x128xf32>
    %cst_35 = arith.constant 0.000000e+00 : f32
    %73 = vector.broadcast %cst_35 : f32 to vector<1x128xf32>
    %74 = arith.maximumf %72, %73 : vector<1x128xf32>
    %c0_36 = arith.constant 0 : index
    %c0_37 = arith.constant 0 : index
    %75 = vector.load %arg8[%c0_36, %c0_37] : memref<2x128xf32, #tpu.memory_space<vmem>>, vector<1x128xf32>
    %c1_38 = arith.constant 1 : index
    %c0_39 = arith.constant 0 : index
    %76 = vector.load %arg8[%c1_38, %c0_39] : memref<2x128xf32, #tpu.memory_space<vmem>>, vector<1x128xf32>
    %cst_40 = arith.constant 9.99999974E-6 : f32
    %77 = vector.broadcast %cst_40 : f32 to vector<1x128xf32>
    %78 = arith.addf %74, %77 : vector<1x128xf32>
    %79 = math.rsqrt %78 : vector<1x128xf32>
    %80 = arith.mulf %75, %79 : vector<1x128xf32>
    %81 = arith.mulf %65, %80 : vector<1x128xf32>
    %82 = arith.subf %76, %81 : vector<1x128xf32>
    %83 = vector.broadcast %80 : vector<1x128xf32> to vector<128x128xf32>
    %84 = arith.mulf %61, %83 : vector<128x128xf32>
    %85 = vector.broadcast %82 : vector<1x128xf32> to vector<128x128xf32>
    %86 = arith.addf %84, %85 : vector<128x128xf32>
    %cst_41 = arith.constant 0.000000e+00 : f32
    %87 = vector.broadcast %cst_41 : f32 to vector<128x128xf32>
    %88 = arith.maximumf %86, %87 : vector<128x128xf32>
    %c0_42 = arith.constant 0 : index
    %c0_43 = arith.constant 0 : index
    %89 = vector.load %arg5[%c0_42, %c0_43] : memref<128x128xf32, #tpu.memory_space<vmem>>, vector<128x128xf32>
    %cst_44 = arith.constant dense<0.000000e+00> : vector<128x128xf32>
    %90 = tpu.matmul %88, %89, %cst_44 {dimension_numbers = #tpu.dot_dimension_numbers<[1], [1], [0], [0], [0, 0, 1, 0], [], []>} : vector<128x128xf32>, vector<128x128xf32>, vector<128x128xf32> -> vector<128x128xf32>
    %cst_45 = arith.constant dense<0.000000e+00> : vector<128xf32>
    %91 = vector.multi_reduction <add>, %90, %cst_45 [0] : vector<128x128xf32> to vector<128xf32>
    %92 = vector.shape_cast %91 : vector<128xf32> to vector<1x128xf32>
    %cst_46 = arith.constant 7.812500e-03 : f32
    %93 = vector.broadcast %cst_46 : f32 to vector<1x128xf32>
    %94 = arith.mulf %92, %93 : vector<1x128xf32>
    %95 = arith.mulf %90, %90 : vector<128x128xf32>
    %cst_47 = arith.constant dense<0.000000e+00> : vector<128xf32>
    %96 = vector.multi_reduction <add>, %95, %cst_47 [0] : vector<128x128xf32> to vector<128xf32>
    %97 = vector.shape_cast %96 : vector<128xf32> to vector<1x128xf32>
    %cst_48 = arith.constant 7.812500e-03 : f32
    %98 = vector.broadcast %cst_48 : f32 to vector<1x128xf32>
    %99 = arith.mulf %97, %98 : vector<1x128xf32>
    %100 = arith.mulf %94, %94 : vector<1x128xf32>
    %101 = arith.subf %99, %100 : vector<1x128xf32>
    %cst_49 = arith.constant 0.000000e+00 : f32
    %102 = vector.broadcast %cst_49 : f32 to vector<1x128xf32>
    %103 = arith.maximumf %101, %102 : vector<1x128xf32>
    %c0_50 = arith.constant 0 : index
    %c0_51 = arith.constant 0 : index
    %104 = vector.load %arg9[%c0_50, %c0_51] : memref<2x128xf32, #tpu.memory_space<vmem>>, vector<1x128xf32>
    %c1_52 = arith.constant 1 : index
    %c0_53 = arith.constant 0 : index
    %105 = vector.load %arg9[%c1_52, %c0_53] : memref<2x128xf32, #tpu.memory_space<vmem>>, vector<1x128xf32>
    %cst_54 = arith.constant 9.99999974E-6 : f32
    %106 = vector.broadcast %cst_54 : f32 to vector<1x128xf32>
    %107 = arith.addf %103, %106 : vector<1x128xf32>
    %108 = math.rsqrt %107 : vector<1x128xf32>
    %109 = arith.mulf %104, %108 : vector<1x128xf32>
    %110 = arith.mulf %94, %109 : vector<1x128xf32>
    %111 = arith.subf %105, %110 : vector<1x128xf32>
    %112 = vector.broadcast %109 : vector<1x128xf32> to vector<128x128xf32>
    %113 = arith.mulf %90, %112 : vector<128x128xf32>
    %114 = vector.broadcast %111 : vector<1x128xf32> to vector<128x128xf32>
    %115 = arith.addf %113, %114 : vector<128x128xf32>
    %cst_55 = arith.constant 0.000000e+00 : f32
    %116 = vector.broadcast %cst_55 : f32 to vector<128x128xf32>
    %117 = arith.maximumf %115, %116 : vector<128x128xf32>
    %c0_56 = arith.constant 0 : index
    %c0_57 = arith.constant 0 : index
    %c0_58 = arith.constant 0 : index
    %118 = vector.load %arg10[%c0_56, %c0_57, %c0_58] : memref<1x128x128xf32, #tpu.memory_space<vmem>>, vector<1x128x128xf32>
    %119 = vector.shape_cast %118 : vector<1x128x128xf32> to vector<128x128xf32>
    %120 = vector.shape_cast %117 : vector<128x128xf32> to vector<1x128x128xf32>
    tpu.vector_store %arg10[%c0_56, %c0_57, %c0_58], %120 {strides = array<i32>} : memref<1x128x128xf32, #tpu.memory_space<vmem>>, vector<1x128x128xf32>,
    %121 = vector.shape_cast %117 : vector<128x128xf32> to vector<2x64x128xf32>
    %cst_59 = arith.constant dense<0xFF800000> : vector<2x128xf32>
    %122 = vector.multi_reduction <maximumf>, %121, %cst_59 [1] : vector<2x64x128xf32> to vector<2x128xf32>
    %c0_60 = arith.constant 0 : index
    %c0_61 = arith.constant 0 : index
    %c0_62 = arith.constant 0 : index
    %123 = vector.load %arg11[%c0_60, %c0_61, %c0_62] : memref<1x2x128xf32, #tpu.memory_space<vmem>>, vector<1x2x128xf32>
    %124 = vector.shape_cast %123 : vector<1x2x128xf32> to vector<2x128xf32>
    %125 = vector.shape_cast %122 : vector<2x128xf32> to vector<1x2x128xf32>
    tpu.vector_store %arg11[%c0_60, %c0_61, %c0_62], %125 {strides = array<i32>} : memref<1x2x128xf32, #tpu.memory_space<vmem>>, vector<1x2x128xf32>,
    return
  }
  func.func @transform_0(%arg0: i32) -> (i32, i32, i32) {
    %c0_i32 = arith.constant 0 : i32
    %c0_i32_0 = arith.constant 0 : i32
    %c0_i32_1 = arith.constant 0 : i32
    return %arg0, %c0_i32, %c0_i32_0 : i32, i32, i32
  }
  func.func @transform_1(%arg0: i32) -> (i32, i32) {
    %c0_i32 = arith.constant 0 : i32
    %c0_i32_0 = arith.constant 0 : i32
    %c0_i32_1 = arith.constant 0 : i32
    return %c0_i32, %c0_i32_0 : i32, i32
  }
  func.func @transform_2(%arg0: i32) -> (i32, i32) {
    %c0_i32 = arith.constant 0 : i32
    %c0_i32_0 = arith.constant 0 : i32
    %c0_i32_1 = arith.constant 0 : i32
    return %c0_i32, %c0_i32_0 : i32, i32
  }
  func.func @transform_3(%arg0: i32) -> (i32, i32) {
    %c0_i32 = arith.constant 0 : i32
    %c0_i32_0 = arith.constant 0 : i32
    %c0_i32_1 = arith.constant 0 : i32
    return %c0_i32, %c0_i32_0 : i32, i32
  }
  func.func @transform_4(%arg0: i32) -> (i32, i32) {
    %c0_i32 = arith.constant 0 : i32
    %c0_i32_0 = arith.constant 0 : i32
    %c0_i32_1 = arith.constant 0 : i32
    return %c0_i32, %c0_i32_0 : i32, i32
  }
  func.func @transform_5(%arg0: i32) -> (i32, i32) {
    %c0_i32 = arith.constant 0 : i32
    %c0_i32_0 = arith.constant 0 : i32
    %c0_i32_1 = arith.constant 0 : i32
    return %c0_i32, %c0_i32_0 : i32, i32
  }
  func.func @transform_6(%arg0: i32) -> (i32, i32) {
    %c0_i32 = arith.constant 0 : i32
    %c0_i32_0 = arith.constant 0 : i32
    %c0_i32_1 = arith.constant 0 : i32
    return %c0_i32, %c0_i32_0 : i32, i32
  }
  func.func @transform_7(%arg0: i32) -> (i32, i32) {
    %c0_i32 = arith.constant 0 : i32
    %c0_i32_0 = arith.constant 0 : i32
    %c0_i32_1 = arith.constant 0 : i32
    return %c0_i32, %c0_i32_0 : i32, i32
  }
  func.func @transform_8(%arg0: i32) -> (i32, i32) {
    %c0_i32 = arith.constant 0 : i32
    %c0_i32_0 = arith.constant 0 : i32
    %c0_i32_1 = arith.constant 0 : i32
    return %c0_i32, %c0_i32_0 : i32, i32
  }
  func.func @transform_9(%arg0: i32) -> (i32, i32, i32) {
    %c0_i32 = arith.constant 0 : i32
    %c0_i32_0 = arith.constant 0 : i32
    %c0_i32_1 = arith.constant 0 : i32
    return %arg0, %c0_i32, %c0_i32_0 : i32, i32, i32
  }
  func.func @transform_10(%arg0: i32) -> (i32, i32, i32) {
    %c0_i32 = arith.constant 0 : i32
    %c0_i32_0 = arith.constant 0 : i32
    %c0_i32_1 = arith.constant 0 : i32
    return %arg0, %c0_i32, %c0_i32_0 : i32, i32, i32
  }
}

</mosaic_0001>

<llo_original>
// kernel: tpu_custom_call.1
$region0: #{tpu_custom_call.1}
  #allocation0 [shape = 'u32[]', space=smem, size = 0x4, offset = 0x4, fixed_abs, tag = 'smem constant byte address 0x4 - core index']
  #allocation1 [shape = 'u32[72,128]{1,0:T(1,128)}', space=vmem, size = 0x9000, scoped, tag = 'internal scratch']
  %s0 = inlined_call_operand.vmem [shape: f32[2,128,3], index: 0, kind: input, shape index: {}]
  %s1 = inlined_call_operand.vmem [shape: f32[64,3], index: 1, kind: input, shape index: {}]
  %s2 = inlined_call_operand.vmem [shape: f32[64,64], index: 2, kind: input, shape index: {}]
  %s3 = inlined_call_operand.vmem [shape: f32[128,64], index: 3, kind: input, shape index: {}]
  %s4 = inlined_call_operand.vmem [shape: f32[128,128], index: 4, kind: input, shape index: {}]
  %s5 = inlined_call_operand.vmem [shape: f32[2,64], index: 5, kind: input, shape index: {}]
  %s6 = inlined_call_operand.vmem [shape: f32[2,64], index: 6, kind: input, shape index: {}]
  %s7 = inlined_call_operand.vmem [shape: f32[2,128], index: 7, kind: input, shape index: {}]
  %s8 = inlined_call_operand.vmem [shape: f32[2,128], index: 8, kind: input, shape index: {}]
  %s9 = inlined_call_operand.hbm [shape: f32[2,128,128], index: 9, kind: output, shape index: {0}]
  %s10 = inlined_call_operand.hbm [shape: f32[2,2,128], index: 10, kind: output, shape index: {1}]
  %11 = xla_tuple %s9, %s10
  %s12 = sld [smem:[#allocation0]]
  $region77: #{tpu_custom_call.1} parent=0
    _
  %s14 = ssub.s32 1, %s12
  %s15 = scalar_select 0, %s14, %s12
  $region1: #{tpu_custom_call.1} parent=0
    #allocation2 [shape = 'u8[131072]{0}', space=vmem, size = 0x20000, scoped, tag = 'output window, operand 0']
    #allocation3 [shape = 's32[2]{0}', space=sflag, size = 0x8, scoped, tag = 'scoped memory for tpu_custom_call.1']
    #allocation4 [shape = 'u8[2048]{0}', space=vmem, size = 0x800, scoped, tag = 'output window, operand 1']
    #allocation5 [shape = 's32[2]{0}', space=sflag, size = 0x8, scoped, tag = 'scoped memory for tpu_custom_call.1']
    %16 = vsyncpa [#allocation3], 0
    %s17 = scalar_lea.sflag [#allocation3], 1
    %18 = vsyncpa %s17, 0
    %19 = vsyncpa [#allocation5], 0
    %s20 = scalar_lea.sflag [#allocation5], 1
    %21 = vsyncpa %s20, 0
    loop: start=0, step=1, limit=4
    $region2: #{tpu_custom_call.1} parent=1 // loop_pre_header
      _
    $region3: #{tpu_custom_call.1} parent=1 // loop_header
      %s23 = sphi 0, %s27
      %p24 = scmp.ge.s32.totalorder %s23, 4
      %s33 = sphi 0, %s35
      %s36 = sphi 0, %s33
      %s37 = sphi 0, %s36
      %s53 = sphi 0, %s37
      %s57 = sphi 0, %s57
      %s59 = sphi 0, %s57
      %s60 = sphi 0, %s59
      %s74 = sphi 0, %s60
      %s78 = sphi 0, %s78
      %s80 = sphi 0, %s78
      %s81 = sphi 0, %s80
      %s95 = sphi 0, %s81
      %s99 = sphi 0, %s99
      %s101 = sphi 0, %s99
      %s102 = sphi 0, %s101
      %s116 = sphi 0, %s102
      %s120 = sphi 0, %s120
      %s122 = sphi 0, %s120
      %s123 = sphi 0, %s122
      %s137 = sphi 0, %s123
      %s141 = sphi 0, %s141
      %s143 = sphi 0, %s141
      %s144 = sphi 0, %s143
      %s158 = sphi 0, %s144
      %s162 = sphi 0, %s162
      %s164 = sphi 0, %s162
      %s165 = sphi 0, %s164
      %s179 = sphi 0, %s165
      %s183 = sphi 0, %s183
      %s185 = sphi 0, %s183
      %s186 = sphi 0, %s185
      %s200 = sphi 0, %s186
      %s204 = sphi 0, %s204
      %s206 = sphi 0, %s204
      %s207 = sphi 0, %s206
      %s221 = sphi 0, %s207
      %s227 = sphi 0, %s229
      %s230 = sphi 0, %s227
      %s231 = sphi 0, %s230
      %s247 = sphi 0, %s231
      %s253 = sphi 0, %s255
      %s256 = sphi 0, %s253
      %s257 = sphi 0, %s256
      %s273 = sphi 0, %s257
    $region4: #{tpu_custom_call.1} parent=1 // loop_header_branch
      %26 = sbr.rel (%p24) target = $region8
    $region5: #{tpu_custom_call.1} parent=1 // loop_body
      %s28 = ssub.s32 %s23, 1
      %s29 = ssub.s32 %s23, 2
      %s30 = sadd.s32 %s23, 1
      %s31 = ssub.s32 %s23, %s30
      %p32 = scmp.eq.s32.totalorder %s31, 0
      %s34 = sadd.s32 %s33, 1
      %s35 = scalar_select %p32, %s33, %s34
      %p38 = pneg %p32
      %p39 = scmp.eq.s32.totalorder %s23, 1
      %p40 = por %p38, %p39
      %p41 = scmp.ne.s32.totalorder %s33, %s36
      %p42 = scmp.eq.s32.totalorder %s23, 0
      %p43 = por %p41, %p42
      %p44 = scmp.ne.s32.totalorder %s33, %s36
      %p45 = scmp.eq.s32.totalorder %s28, 1
      %p46 = por %p44, %p45
      %p47 = scmp.ne.s32.totalorder %s36, %s37
      %p48 = scmp.eq.s32.totalorder %s28, 0
      %p49 = por %p47, %p48
      %p50 = scmp.ne.s32.totalorder %s36, %s37
      %p51 = scmp.eq.s32.totalorder %s29, 1
      %p52 = por %p50, %p51
      %p54 = scmp.ne.s32.totalorder %s37, %s53
      %p55 = scmp.eq.s32.totalorder %s29, 0
      %p56 = por %p54, %p55
      %s58 = sadd.s32 %s57, 1
      %p61 = scmp.eq.s32.totalorder %s23, 1
      %p62 = scmp.ne.s32.totalorder %s57, %s59
      %p63 = scmp.eq.s32.totalorder %s23, 0
      %p64 = por %p62, %p63
      %p65 = scmp.ne.s32.totalorder %s57, %s59
      %p66 = scmp.eq.s32.totalorder %s28, 1
      %p67 = por %p65, %p66
      %p68 = scmp.ne.s32.totalorder %s59, %s60
      %p69 = scmp.eq.s32.totalorder %s28, 0
      %p70 = por %p68, %p69
      %p71 = scmp.ne.s32.totalorder %s59, %s60
      %p72 = scmp.eq.s32.totalorder %s29, 1
      %p73 = por %p71, %p72
      %p75 = scmp.ne.s32.totalorder %s60, %s74
      %p76 = scmp.eq.s32.totalorder %s29, 0
      %p77 = por %p75, %p76
      %s79 = sadd.s32 %s78, 1
      %p82 = scmp.eq.s32.totalorder %s23, 1
      %p83 = scmp.ne.s32.totalorder %s78, %s80
      %p84 = scmp.eq.s32.totalorder %s23, 0
      %p85 = por %p83, %p84
      %p86 = scmp.ne.s32.totalorder %s78, %s80
      %p87 = scmp.eq.s32.totalorder %s28, 1
      %p88 = por %p86, %p87
      %p89 = scmp.ne.s32.totalorder %s80, %s81
      %p90 = scmp.eq.s32.totalorder %s28, 0
      %p91 = por %p89, %p90
      %p92 = scmp.ne.s32.totalorder %s80, %s81
      %p93 = scmp.eq.s32.totalorder %s29, 1
      %p94 = por %p92, %p93
      %p96 = scmp.ne.s32.totalorder %s81, %s95
      %p97 = scmp.eq.s32.totalorder %s29, 0
      %p98 = por %p96, %p97
      %s100 = sadd.s32 %s99, 1
      %p103 = scmp.eq.s32.totalorder %s23, 1
      %p104 = scmp.ne.s32.totalorder %s99, %s101
      %p105 = scmp.eq.s32.totalorder %s23, 0
      %p106 = por %p104, %p105
      %p107 = scmp.ne.s32.totalorder %s99, %s101
      %p108 = scmp.eq.s32.totalorder %s28, 1
      %p109 = por %p107, %p108
      %p110 = scmp.ne.s32.totalorder %s101, %s102
      %p111 = scmp.eq.s32.totalorder %s28, 0
      %p112 = por %p110, %p111
      %p113 = scmp.ne.s32.totalorder %s101, %s102
      %p114 = scmp.eq.s32.totalorder %s29, 1
      %p115 = por %p113, %p114
      %p117 = scmp.ne.s32.totalorder %s102, %s116
      %p118 = scmp.eq.s32.totalorder %s29, 0
      %p119 = por %p117, %p118
      %s121 = sadd.s32 %s120, 1
      %p124 = scmp.eq.s32.totalorder %s23, 1
      %p125 = scmp.ne.s32.totalorder %s120, %s122
      %p126 = scmp.eq.s32.totalorder %s23, 0
      %p127 = por %p125, %p126
      %p128 = scmp.ne.s32.totalorder %s120, %s122
      %p129 = scmp.eq.s32.totalorder %s28, 1
      %p130 = por %p128, %p129
      %p131 = scmp.ne.s32.totalorder %s122, %s123
      %p132 = scmp.eq.s32.totalorder %s28, 0
      %p133 = por %p131, %p132
      %p134 = scmp.ne.s32.totalorder %s122, %s123
      %p135 = scmp.eq.s32.totalorder %s29, 1
      %p136 = por %p134, %p135
      %p138 = scmp.ne.s32.totalorder %s123, %s137
      %p139 = scmp.eq.s32.totalorder %s29, 0
      %p140 = por %p138, %p139
      %s142 = sadd.s32 %s141, 1
      %p145 = scmp.eq.s32.totalorder %s23, 1
      %p146 = scmp.ne.s32.totalorder %s141, %s143
      %p147 = scmp.eq.s32.totalorder %s23, 0
      %p148 = por %p146, %p147
      %p149 = scmp.ne.s32.totalorder %s141, %s143
      %p150 = scmp.eq.s32.totalorder %s28, 1
      %p151 = por %p149, %p150
      %p152 = scmp.ne.s32.totalorder %s143, %s144
      %p153 = scmp.eq.s32.totalorder %s28, 0
      %p154 = por %p152, %p153
      %p155 = scmp.ne.s32.totalorder %s143, %s144
      %p156 = scmp.eq.s32.totalorder %s29, 1
      %p157 = por %p155, %p156
      %p159 = scmp.ne.s32.totalorder %s144, %s158
      %p160 = scmp.eq.s32.totalorder %s29, 0
      %p161 = por %p159, %p160
      %s163 = sadd.s32 %s162, 1
      %p166 = scmp.eq.s32.totalorder %s23, 1
      %p167 = scmp.ne.s32.totalorder %s162, %s164
      %p168 = scmp.eq.s32.totalorder %s23, 0
      %p169 = por %p167, %p168
      %p170 = scmp.ne.s32.totalorder %s162, %s164
      %p171 = scmp.eq.s32.totalorder %s28, 1
      %p172 = por %p170, %p171
      %p173 = scmp.ne.s32.totalorder %s164, %s165
      %p174 = scmp.eq.s32.totalorder %s28, 0
      %p175 = por %p173, %p174
      %p176 = scmp.ne.s32.totalorder %s164, %s165
      %p177 = scmp.eq.s32.totalorder %s29, 1
      %p178 = por %p176, %p177
      %p180 = scmp.ne.s32.totalorder %s165, %s179
      %p181 = scmp.eq.s32.totalorder %s29, 0
      %p182 = por %p180, %p181
      %s184 = sadd.s32 %s183, 1
      %p187 = scmp.eq.s32.totalorder %s23, 1
      %p188 = scmp.ne.s32.totalorder %s183, %s185
      %p189 = scmp.eq.s32.totalorder %s23, 0
      %p190 = por %p188, %p189
      %p191 = scmp.ne.s32.totalorder %s183, %s185
      %p192 = scmp.eq.s32.totalorder %s28, 1
      %p193 = por %p191, %p192
      %p194 = scmp.ne.s32.totalorder %s185, %s186
      %p195 = scmp.eq.s32.totalorder %s28, 0
      %p196 = por %p194, %p195
      %p197 = scmp.ne.s32.totalorder %s185, %s186
      %p198 = scmp.eq.s32.totalorder %s29, 1
      %p199 = por %p197, %p198
      %p201 = scmp.ne.s32.totalorder %s186, %s200
      %p202 = scmp.eq.s32.totalorder %s29, 0
      %p203 = por %p201, %p202
      %s205 = sadd.s32 %s204, 1
      %p208 = scmp.eq.s32.totalorder %s23, 1
      %p209 = scmp.ne.s32.totalorder %s204, %s206
      %p210 = scmp.eq.s32.totalorder %s23, 0
      %p211 = por %p209, %p210
      %p212 = scmp.ne.s32.totalorder %s204, %s206
      %p213 = scmp.eq.s32.totalorder %s28, 1
      %p214 = por %p212, %p213
      %p215 = scmp.ne.s32.totalorder %s206, %s207
      %p216 = scmp.eq.s32.totalorder %s28, 0
      %p217 = por %p215, %p216
      %p218 = scmp.ne.s32.totalorder %s206, %s207
      %p219 = scmp.eq.s32.totalorder %s29, 1
      %p220 = por %p218, %p219
      %p222 = scmp.ne.s32.totalorder %s207, %s221
      %p223 = scmp.eq.s32.totalorder %s29, 0
      %p224 = por %p222, %p223
      %s225 = ssub.s32 %s23, %s30
      %p226 = scmp.eq.s32.totalorder %s225, 0
      %s228 = sadd.s32 %s227, 1
      %s229 = scalar_select %p226, %s227, %s228
      %p232 = pneg %p226
      %p233 = scmp.eq.s32.totalorder %s23, 1
      %p234 = por %p232, %p233
      %p235 = scmp.ne.s32.totalorder %s227, %s230
      %p236 = scmp.eq.s32.totalorder %s23, 0
      %p237 = por %p235, %p236
      %p238 = scmp.ne.s32.totalorder %s227, %s230
      %p239 = scmp.eq.s32.totalorder %s28, 1
      %p240 = por %p238, %p239
      %p241 = scmp.ne.s32.totalorder %s230, %s231
      %p242 = scmp.eq.s32.totalorder %s28, 0
      %p243 = por %p241, %p242
      %p244 = scmp.ne.s32.totalorder %s230, %s231
      %p245 = scmp.eq.s32.totalorder %s29, 1
      %p246 = por %p244, %p245
      %p248 = scmp.ne.s32.totalorder %s231, %s247
      %p249 = scmp.eq.s32.totalorder %s29, 0
      %p250 = por %p248, %p249
      %s251 = ssub.s32 %s23, %s30
      %p252 = scmp.eq.s32.totalorder %s251, 0
      %s254 = sadd.s32 %s253, 1
      %s255 = scalar_select %p252, %s253, %s254
      %p258 = pneg %p252
      %p259 = scmp.eq.s32.totalorder %s23, 1
      %p260 = por %p258, %p259
      %p261 = scmp.ne.s32.totalorder %s253, %s256
      %p262 = scmp.eq.s32.totalorder %s23, 0
      %p263 = por %p261, %p262
      %p264 = scmp.ne.s32.totalorder %s253, %s256
      %p265 = scmp.eq.s32.totalorder %s28, 1
      %p266 = por %p264, %p265
      %p267 = scmp.ne.s32.totalorder %s256, %s257
      %p268 = scmp.eq.s32.totalorder %s28, 0
      %p269 = por %p267, %p268
      %p270 = scmp.ne.s32.totalorder %s256, %s257
      %p271 = scmp.eq.s32.totalorder %s29, 1
      %p272 = por %p270, %p271
      %p274 = scmp.ne.s32.totalorder %s257, %s273
      %p275 = scmp.eq.s32.totalorder %s29, 0
      %p276 = por %p274, %p275
      %p277 = scmp.le.s32.totalorder 1, %s23
      %p278 = scmp.lt.s32.totalorder %s23, 3
      %p279 = pnand %p277, %p278
      %p280 = pneg %p279
      // Predicated region
      $region9: #{tpu_custom_call.1} parent=5 // pred_check
        _
      $region10: #{tpu_custom_call.1} parent=5 // pred_check_branch
        %282 = sbr.rel (%p279) target = $region12
      $region11: #{tpu_custom_call.1} parent=5 // pred_region
        %s283 = ssub.s32 %s23, 1
        // Predicated region
        $region13: #{tpu_custom_call.1} parent=11 // pred_check
          %p284 = pneg %p70
        $region14: #{tpu_custom_call.1} parent=11 // pred_check_branch
          %286 = sbr.rel (%p284) target = $region16
        $region15: #{tpu_custom_call.1} parent=11 // pred_region
          _
        $region16: #{tpu_custom_call.1} parent=11 // pred_fallthru
          _
        // Predicated region
        $region17: #{tpu_custom_call.1} parent=11 // pred_check
          %p287 = pneg %p91
        $region18: #{tpu_custom_call.1} parent=11 // pred_check_branch
          %289 = sbr.rel (%p287) target = $region20
        $region19: #{tpu_custom_call.1} parent=11 // pred_region
          _
        $region20: #{tpu_custom_call.1} parent=11 // pred_fallthru
          _
        // Predicated region
        $region21: #{tpu_custom_call.1} parent=11 // pred_check
          %p290 = pneg %p112
        $region22: #{tpu_custom_call.1} parent=11 // pred_check_branch
          %292 = sbr.rel (%p290) target = $region24
        $region23: #{tpu_custom_call.1} parent=11 // pred_region
          _
        $region24: #{tpu_custom_call.1} parent=11 // pred_fallthru
          _
        // Predicated region
        $region25: #{tpu_custom_call.1} parent=11 // pred_check
          %p293 = pneg %p133
        $region26: #{tpu_custom_call.1} parent=11 // pred_check_branch
          %295 = sbr.rel (%p293) target = $region28
        $region27: #{tpu_custom_call.1} parent=11 // pred_region
          _
        $region28: #{tpu_custom_call.1} parent=11 // pred_fallthru
          _
        // Predicated region
        $region29: #{tpu_custom_call.1} parent=11 // pred_check
          %p296 = pneg %p154
        $region30: #{tpu_custom_call.1} parent=11 // pred_check_branch
          %298 = sbr.rel (%p296) target = $region32
        $region31: #{tpu_custom_call.1} parent=11 // pred_region
          _
        $region32: #{tpu_custom_call.1} parent=11 // pred_fallthru
          _
        // Predicated region
        $region33: #{tpu_custom_call.1} parent=11 // pred_check
          %p299 = pneg %p175
        $region34: #{tpu_custom_call.1} parent=11 // pred_check_branch
          %301 = sbr.rel (%p299) target = $region36
        $region35: #{tpu_custom_call.1} parent=11 // pred_region
          _
        $region36: #{tpu_custom_call.1} parent=11 // pred_fallthru
          _
        // Predicated region
        $region37: #{tpu_custom_call.1} parent=11 // pred_check
          %p302 = pneg %p196
        $region38: #{tpu_custom_call.1} parent=11 // pred_check_branch
          %304 = sbr.rel (%p302) target = $region40
        $region39: #{tpu_custom_call.1} parent=11 // pred_region
          _
        $region40: #{tpu_custom_call.1} parent=11 // pred_fallthru
          _
        // Predicated region
        $region41: #{tpu_custom_call.1} parent=11 // pred_check
          %p305 = pneg %p217
        $region42: #{tpu_custom_call.1} parent=11 // pred_check_branch
          %307 = sbr.rel (%p305) target = $region44
        $region43: #{tpu_custom_call.1} parent=11 // pred_region
          _
        $region44: #{tpu_custom_call.1} parent=11 // pred_fallthru
          _
      $region12: #{tpu_custom_call.1} parent=5 // pred_fallthru
        _
      %p308 = scmp.lt.s32.totalorder %s23, 2
      // Predicated region
      $region45: #{tpu_custom_call.1} parent=5 // pred_check
        %p309 = pneg %p308
      $region46: #{tpu_custom_call.1} parent=5 // pred_check_branch
        %311 = sbr.rel (%p309) target = $region48
      $region47: #{tpu_custom_call.1} parent=5 // pred_region
        // Predicated region
        $region49: #{tpu_custom_call.1} parent=47 // pred_check
          %p312 = pneg %p43
        $region50: #{tpu_custom_call.1} parent=47 // pred_check_branch
          %314 = sbr.rel (%p312) target = $region52
        $region51: #{tpu_custom_call.1} parent=47 // pred_region
          %p315 = scmp.lt.s32.totalorder %s23, 1
          %s316 = scalar_select %p315, %s23, 1
          %s317 = smul.addr %s316, 16
          %s318 = smul.addr %s317, 8
          %s319 = scalar_lea.vmem %s0, %s318
        $region52: #{tpu_custom_call.1} parent=47 // pred_fallthru
          _
      $region48: #{tpu_custom_call.1} parent=5 // pred_fallthru
        _
      %p320 = scmp.le.s32.totalorder 1, %s23
      %p321 = scmp.lt.s32.totalorder %s23, 3
      %p322 = pnand %p320, %p321
      %p323 = pneg %p322
      // Predicated region
      $region53: #{tpu_custom_call.1} parent=5 // pred_check
        _
      $region54: #{tpu_custom_call.1} parent=5 // pred_check_branch
        %325 = sbr.rel (%p322) target = $region56
      $region55: #{tpu_custom_call.1} parent=5 // pred_region
        %s326 = ssub.s32 %s23, 1
        %p327 = scmp.lt.s32.totalorder %s28, 1
        %s328 = scalar_select %p327, %s28, 1
        %s329 = smul.addr %s328, 16
        %s330 = smul.addr %s329, 8
        %s331 = scalar_lea.vmem %s0, %s330
        %p332 = pneg %p49
        %p333 = pneg %p46
        %p334 = pneg %p70
        %p335 = pneg %p67
        %p336 = pneg %p91
        %p337 = pneg %p88
        %p338 = pneg %p112
        %p339 = pneg %p109
        %p340 = pneg %p133
        %p341 = pneg %p130
        %p342 = pneg %p154
        %p343 = pneg %p151
        %p344 = pneg %p175
        %p345 = pneg %p172
        %p346 = pneg %p196
        %p347 = pneg %p193
        %p348 = pneg %p217
        %p349 = pneg %p214
        %p350 = pneg %p243
        %p351 = pneg %p240
        %s352 = sand.u32 %s230, 1
        %s353 = scalar_lea.sflag [#allocation3], %s352
        %s354 = sand.u32 %s230, 1
        %s355 = smul.addr %s354, 128
        %s356 = scalar_lea.vmem [#allocation2], %s355
        %p357 = pneg %p269
        %p358 = pneg %p266
        %s359 = sand.u32 %s256, 1
        %s360 = scalar_lea.sflag [#allocation5], %s359
        %s361 = sand.u32 %s256, 1
        %s362 = smul.addr %s361, 2
        %s363 = scalar_lea.vmem [#allocation4], %s362
        %p364 = scmp.lt.s32.totalorder %s28, 1
        %s365 = scalar_select %p364, %s28, 1
        %s366 = smul.addr %s365, 16
        %s367 = smul.addr %s366, 8
        %s368 = scalar_lea.vmem %s0, %s367
        %v369 = vld [vmem:[%s368] sm:$0xff]
        %v370 = vld [vmem:[%s368 + $0x8] sm:$0xff]
        %v371 = vld [vmem:[%s368 + $0x10] sm:$0xff]
        %v372 = vld [vmem:[%s368 + $0x18] sm:$0xff]
        %v373 = vld [vmem:[%s368 + $0x20] sm:$0xff]
        %v374 = vld [vmem:[%s368 + $0x28] sm:$0xff]
        %v375 = vld [vmem:[%s368 + $0x30] sm:$0xff]
        %v376 = vld [vmem:[%s368 + $0x38] sm:$0xff]
        %v377 = vld [vmem:[%s368 + $0x40] sm:$0xff]
        %v378 = vld [vmem:[%s368 + $0x48] sm:$0xff]
        %v379 = vld [vmem:[%s368 + $0x50] sm:$0xff]
        %v380 = vld [vmem:[%s368 + $0x58] sm:$0xff]
        %v381 = vld [vmem:[%s368 + $0x60] sm:$0xff]
        %v382 = vld [vmem:[%s368 + $0x68] sm:$0xff]
        %v383 = vld [vmem:[%s368 + $0x70] sm:$0xff]
        %v384 = vld [vmem:[%s368 + $0x78] sm:$0xff]
        %v385 = vld [vmem:[%s1] sm:$0xff]
        %v386 = vld [vmem:[%s1 + $0x8] sm:$0xff]
        %v387 = vld [vmem:[%s1 + $0x10] sm:$0xff]
        %v388 = vld [vmem:[%s1 + $0x18] sm:$0xff]
        %v389 = vld [vmem:[%s1 + $0x20] sm:$0xff]
        %v390 = vld [vmem:[%s1 + $0x28] sm:$0xff]
        %v391 = vld [vmem:[%s1 + $0x30] sm:$0xff]
        %v392 = vld [vmem:[%s1 + $0x38] sm:$0xff]
        %vm393 = vcmask 23552
        %v395 = vsel %vm393, %v369, 0
        %v398 = vsel %vm393, %v370, 0
        %v401 = vsel %vm393, %v371, 0
        %v404 = vsel %vm393, %v372, 0
        %v407 = vsel %vm393, %v373, 0
        %v410 = vsel %vm393, %v374, 0
        %v413 = vsel %vm393, %v375, 0
        %v416 = vsel %vm393, %v376, 0
        %v419 = vsel %vm393, %v377, 0
        %v422 = vsel %vm393, %v378, 0
        %v425 = vsel %vm393, %v379, 0
        %v428 = vsel %vm393, %v380, 0
        %v431 = vsel %vm393, %v381, 0
        %v434 = vsel %vm393, %v382, 0
        %v437 = vsel %vm393, %v383, 0
        %v440 = vsel %vm393, %v384, 0
        %v443 = vsel %vm393, %v385, 0
        %v446 = vsel %vm393, %v386, 0
        %v449 = vsel %vm393, %v387, 0
        %v452 = vsel %vm393, %v388, 0
        %v455 = vsel %vm393, %v389, 0
        %v458 = vsel %vm393, %v390, 0
        %v461 = vsel %vm393, %v391, 0
        %v464 = vsel %vm393, %v392, 0
        %466 = vmatpush.xpose.msra.mxu0 0.0
        %467 = vmatpush.xpose.msra.mxu0 0.0
        %468 = vmatpush.xpose.msra.mxu0 0.0
        %469 = vmatpush.xpose.msra.mxu0 0.0
        %470 = vmatpush.xpose.msra.mxu0 0.0
        %471 = vmatpush.xpose.msra.mxu0 0.0
        %472 = vmatpush.xpose.msra.mxu0 0.0
        %473 = vmatpush.xpose.msra.mxu0 0.0
        %474 = vmatpush.xpose.msra.mxu0 %v464
        %475 = vmatpush.xpose.msra.mxu0 %v461
        %476 = vmatpush.xpose.msra.mxu0 %v458
        %477 = vmatpush.xpose.msra.mxu0 %v455
        %478 = vmatpush.xpose.msra.mxu0 %v452
        %479 = vmatpush.xpose.msra.mxu0 %v449
        %480 = vmatpush.xpose.msra.mxu0 %v446
        %481 = vmatpush.xpose.msra.mxu0 %v443
        %482 = vmatmul.f32.gmra.mxu0 %v395
        %v483 = vpop.f32.mrf.mxu0
        %v484 = vadd.f32 0.0, %v483
        %485 = vmatmul.f32.gmra.mxu0 %v398
        %v486 = vpop.f32.mrf.mxu0
        %v487 = vadd.f32 0.0, %v486
        %488 = vmatmul.f32.gmra.mxu0 %v401
        %v489 = vpop.f32.mrf.mxu0
        %v490 = vadd.f32 0.0, %v489
        %491 = vmatmul.f32.gmra.mxu0 %v404
        %v492 = vpop.f32.mrf.mxu0
        %v493 = vadd.f32 0.0, %v492
        %494 = vmatmul.f32.gmra.mxu0 %v407
        %v495 = vpop.f32.mrf.mxu0
        %v496 = vadd.f32 0.0, %v495
        %497 = vmatmul.f32.gmra.mxu0 %v410
        %v498 = vpop.f32.mrf.mxu0
        %v499 = vadd.f32 0.0, %v498
        %500 = vmatmul.f32.gmra.mxu0 %v413
        %v501 = vpop.f32.mrf.mxu0
        %v502 = vadd.f32 0.0, %v501
        %503 = vmatmul.f32.gmra.mxu0 %v416
        %v504 = vpop.f32.mrf.mxu0
        %v505 = vadd.f32 0.0, %v504
        %506 = vmatmul.f32.gmra.mxu0 %v419
        %v507 = vpop.f32.mrf.mxu0
        %v508 = vadd.f32 0.0, %v507
        %509 = vmatmul.f32.gmra.mxu0 %v422
        %v510 = vpop.f32.mrf.mxu0
        %v511 = vadd.f32 0.0, %v510
        %512 = vmatmul.f32.gmra.mxu0 %v425
        %v513 = vpop.f32.mrf.mxu0
        %v514 = vadd.f32 0.0, %v513
        %515 = vmatmul.f32.gmra.mxu0 %v428
        %v516 = vpop.f32.mrf.mxu0
        %v517 = vadd.f32 0.0, %v516
        %518 = vmatmul.f32.gmra.mxu0 %v431
        %v519 = vpop.f32.mrf.mxu0
        %v520 = vadd.f32 0.0, %v519
        %521 = vmatmul.f32.gmra.mxu0 %v434
        %v522 = vpop.f32.mrf.mxu0
        %v523 = vadd.f32 0.0, %v522
        %524 = vmatmul.f32.gmra.mxu0 %v437
        %v525 = vpop.f32.mrf.mxu0
        %v526 = vadd.f32 0.0, %v525
        %527 = vmatmul.f32.gmra.mxu0 %v440
        %v528 = vpop.f32.mrf.mxu0
        %v529 = vadd.f32 0.0, %v528
        %530 = vdwg.mxu0
        %vm531 = vcmask 523264
        %v532 = vsel %vm531, %v484, 0.0
        %v533 = vsel %vm531, %v487, 0.0
        %v534 = vadd.f32 %v532, %v533
        %v535 = vsel %vm531, %v490, 0.0
        %v536 = vadd.f32 %v534, %v535
        %v537 = vsel %vm531, %v493, 0.0
        %v538 = vadd.f32 %v536, %v537
        %v539 = vsel %vm531, %v496, 0.0
        %v540 = vadd.f32 %v538, %v539
        %v541 = vsel %vm531, %v499, 0.0
        %v542 = vadd.f32 %v540, %v541
        %v543 = vsel %vm531, %v502, 0.0
        %v544 = vadd.f32 %v542, %v543
        %v545 = vsel %vm531, %v505, 0.0
        %v546 = vadd.f32 %v544, %v545
        %v547 = vsel %vm531, %v508, 0.0
        %v548 = vadd.f32 %v546, %v547
        %v549 = vsel %vm531, %v511, 0.0
        %v550 = vadd.f32 %v548, %v549
        %v551 = vsel %vm531, %v514, 0.0
        %v552 = vadd.f32 %v550, %v551
        %v553 = vsel %vm531, %v517, 0.0
        %v554 = vadd.f32 %v552, %v553
        %v555 = vsel %vm531, %v520, 0.0
        %v556 = vadd.f32 %v554, %v555
        %v557 = vsel %vm531, %v523, 0.0
        %v558 = vadd.f32 %v556, %v557
        %v559 = vsel %vm531, %v526, 0.0
        %v560 = vadd.f32 %v558, %v559
        %v561 = vsel %vm531, %v529, 0.0
        %v562 = vadd.f32 %v560, %v561
        %v563 = vrot.slane %v562, 4
        %v564 = vadd.f32 %v562, %v563
        %v565 = vrot.slane %v564, 2
        %v566 = vadd.f32 %v564, %v565
        %v567 = vrot.slane %v566, 1
        %v568 = vadd.f32 %v566, %v567
        %v569 = vmul.f32 %v568, 0.0078125
        %v570 = vmul.f32 %v484, %v484
        %v571 = vmul.f32 %v487, %v487
        %v572 = vmul.f32 %v490, %v490
        %v573 = vmul.f32 %v493, %v493
        %v574 = vmul.f32 %v496, %v496
        %v575 = vmul.f32 %v499, %v499
        %v576 = vmul.f32 %v502, %v502
        %v577 = vmul.f32 %v505, %v505
        %v578 = vmul.f32 %v508, %v508
        %v579 = vmul.f32 %v511, %v511
        %v580 = vmul.f32 %v514, %v514
        %v581 = vmul.f32 %v517, %v517
        %v582 = vmul.f32 %v520, %v520
        %v583 = vmul.f32 %v523, %v523
        %v584 = vmul.f32 %v526, %v526
        %v585 = vmul.f32 %v529, %v529
        %v586 = vsel %vm531, %v570, 0.0
        %v587 = vsel %vm531, %v571, 0.0
        %v588 = vadd.f32 %v586, %v587
        %v589 = vsel %vm531, %v572, 0.0
        %v590 = vadd.f32 %v588, %v589
        %v591 = vsel %vm531, %v573, 0.0
        %v592 = vadd.f32 %v590, %v591
        %v593 = vsel %vm531, %v574, 0.0
        %v594 = vadd.f32 %v592, %v593
        %v595 = vsel %vm531, %v575, 0.0
        %v596 = vadd.f32 %v594, %v595
        %v597 = vsel %vm531, %v576, 0.0
        %v598 = vadd.f32 %v596, %v597
        %v599 = vsel %vm531, %v577, 0.0
        %v600 = vadd.f32 %v598, %v599
        %v601 = vsel %vm531, %v578, 0.0
        %v602 = vadd.f32 %v600, %v601
        %v603 = vsel %vm531, %v579, 0.0
        %v604 = vadd.f32 %v602, %v603
        %v605 = vsel %vm531, %v580, 0.0
        %v606 = vadd.f32 %v604, %v605
        %v607 = vsel %vm531, %v581, 0.0
        %v608 = vadd.f32 %v606, %v607
        %v609 = vsel %vm531, %v582, 0.0
        %v610 = vadd.f32 %v608, %v609
        %v611 = vsel %vm531, %v583, 0.0
        %v612 = vadd.f32 %v610, %v611
        %v613 = vsel %vm531, %v584, 0.0
        %v614 = vadd.f32 %v612, %v613
        %v615 = vsel %vm531, %v585, 0.0
        %v616 = vadd.f32 %v614, %v615
        %v617 = vrot.slane %v616, 4
        %v618 = vadd.f32 %v616, %v617
        %v619 = vrot.slane %v618, 2
        %v620 = vadd.f32 %v618, %v619
        %v621 = vrot.slane %v620, 1
        %v622 = vadd.f32 %v620, %v621
        %v623 = vmul.f32 %v622, 0.0078125
        %v624 = vmul.f32 %v569, %v569
        %v625 = vsub.f32 %v623, %v624
        %v626 = vmax.f32 %v625, 0.0
        %v627 = vld [vmem:[%s5] sm:$0x1]
        %v628 = vld [vmem:[%s5 + $0x1] sm:$0x1]
        %v629 = vadd.f32 %v626, 1e-05
        %v630 = vrsqrt.pop %v629
        %v631 = vmul.f32 %v630, %v629
        %v632 = vmul.f32 %v631, %v630
        %v633 = vmul.f32 0.5, %v632
        %v634 = vsub.f32 1.5, %v633
        %v635 = vmul.f32 %v630, %v634
        %vm636 = vweird.f32 %v629
        %vm637 = vweird.f32 %v630
        %vm638 = vmor %vm636, %vm637
        %v639 = vsel %vm638, %v630, %v635
        %v640 = vmul.f32 %v627, %v639
        %v641 = vmul.f32 %v569, %v640
        %v642 = vsub.f32 %v628, %v641
        %v643 = vperm.slane %v640, 0
        %v644 = vmul.f32 %v484, %v643
        %v645 = vmul.f32 %v487, %v643
        %v646 = vmul.f32 %v490, %v643
        %v647 = vmul.f32 %v493, %v643
        %v648 = vmul.f32 %v496, %v643
        %v649 = vmul.f32 %v499, %v643
        %v650 = vmul.f32 %v502, %v643
        %v651 = vmul.f32 %v505, %v643
        %v652 = vmul.f32 %v508, %v643
        %v653 = vmul.f32 %v511, %v643
        %v654 = vmul.f32 %v514, %v643
        %v655 = vmul.f32 %v517, %v643
        %v656 = vmul.f32 %v520, %v643
        %v657 = vmul.f32 %v523, %v643
        %v658 = vmul.f32 %v526, %v643
        %v659 = vmul.f32 %v529, %v643
        %v660 = vperm.slane %v642, 0
        %v661 = vadd.f32 %v644, %v660
        %v662 = vadd.f32 %v645, %v660
        %v663 = vadd.f32 %v646, %v660
        %v664 = vadd.f32 %v647, %v660
        %v665 = vadd.f32 %v648, %v660
        %v666 = vadd.f32 %v649, %v660
        %v667 = vadd.f32 %v650, %v660
        %v668 = vadd.f32 %v651, %v660
        %v669 = vadd.f32 %v652, %v660
        %v670 = vadd.f32 %v653, %v660
        %v671 = vadd.f32 %v654, %v660
        %v672 = vadd.f32 %v655, %v660
        %v673 = vadd.f32 %v656, %v660
        %v674 = vadd.f32 %v657, %v660
        %v675 = vadd.f32 %v658, %v660
        %v676 = vadd.f32 %v659, %v660
        %v677 = vmax.f32 %v661, 0.0
        %v678 = vmax.f32 %v662, 0.0
        %v679 = vmax.f32 %v663, 0.0
        %v680 = vmax.f32 %v664, 0.0
        %v681 = vmax.f32 %v665, 0.0
        %v682 = vmax.f32 %v666, 0.0
        %v683 = vmax.f32 %v667, 0.0
        %v684 = vmax.f32 %v668, 0.0
        %v685 = vmax.f32 %v669, 0.0
        %v686 = vmax.f32 %v670, 0.0
        %v687 = vmax.f32 %v671, 0.0
        %v688 = vmax.f32 %v672, 0.0
        %v689 = vmax.f32 %v673, 0.0
        %v690 = vmax.f32 %v674, 0.0
        %v691 = vmax.f32 %v675, 0.0
        %v692 = vmax.f32 %v676, 0.0
        %v693 = vld [vmem:[%s2] sm:$0xff]
        %v694 = vld [vmem:[%s2 + $0x8] sm:$0xff]
        %v695 = vld [vmem:[%s2 + $0x10] sm:$0xff]
        %v696 = vld [vmem:[%s2 + $0x18] sm:$0xff]
        %v697 = vld [vmem:[%s2 + $0x20] sm:$0xff]
        %v698 = vld [vmem:[%s2 + $0x28] sm:$0xff]
        %v699 = vld [vmem:[%s2 + $0x30] sm:$0xff]
        %v700 = vld [vmem:[%s2 + $0x38] sm:$0xff]
        %v702 = vsel %vm531, %v677, 0
        %v705 = vsel %vm531, %v678, 0
        %v708 = vsel %vm531, %v679, 0
        %v711 = vsel %vm531, %v680, 0
        %v714 = vsel %vm531, %v681, 0
        %v717 = vsel %vm531, %v682, 0
        %v720 = vsel %vm531, %v683, 0
        %v723 = vsel %vm531, %v684, 0
        %v726 = vsel %vm531, %v685, 0
        %v729 = vsel %vm531, %v686, 0
        %v732 = vsel %vm531, %v687, 0
        %v735 = vsel %vm531, %v688, 0
        %v738 = vsel %vm531, %v689, 0
        %v741 = vsel %vm531, %v690, 0
        %v744 = vsel %vm531, %v691, 0
        %v747 = vsel %vm531, %v692, 0
        %v750 = vsel %vm531, %v693, 0
        %v753 = vsel %vm531, %v694, 0
        %v756 = vsel %vm531, %v695, 0
        %v759 = vsel %vm531, %v696, 0
        %v762 = vsel %vm531, %v697, 0
        %v765 = vsel %vm531, %v698, 0
        %v768 = vsel %vm531, %v699, 0
        %v771 = vsel %vm531, %v700, 0
        %773 = vmatpush.xpose.msra.mxu0 0.0
        %774 = vmatpush.xpose.msra.mxu0 0.0
        %775 = vmatpush.xpose.msra.mxu0 0.0
        %776 = vmatpush.xpose.msra.mxu0 0.0
        %777 = vmatpush.xpose.msra.mxu0 0.0
        %778 = vmatpush.xpose.msra.mxu0 0.0
        %779 = vmatpush.xpose.msra.mxu0 0.0
        %780 = vmatpush.xpose.msra.mxu0 0.0
        %781 = vmatpush.xpose.msra.mxu0 %v771
        %782 = vmatpush.xpose.msra.mxu0 %v768
        %783 = vmatpush.xpose.msra.mxu0 %v765
        %784 = vmatpush.xpose.msra.mxu0 %v762
        %785 = vmatpush.xpose.msra.mxu0 %v759
        %786 = vmatpush.xpose.msra.mxu0 %v756
        %787 = vmatpush.xpose.msra.mxu0 %v753
        %788 = vmatpush.xpose.msra.mxu0 %v750
        %789 = vmatmul.f32.gmra.mxu0 %v702
        %v790 = vpop.f32.mrf.mxu0
        %v791 = vadd.f32 0.0, %v790
        %792 = vmatmul.f32.gmra.mxu0 %v705
        %v793 = vpop.f32.mrf.mxu0
        %v794 = vadd.f32 0.0, %v793
        %795 = vmatmul.f32.gmra.mxu0 %v708
        %v796 = vpop.f32.mrf.mxu0
        %v797 = vadd.f32 0.0, %v796
        %798 = vmatmul.f32.gmra.mxu0 %v711
        %v799 = vpop.f32.mrf.mxu0
        %v800 = vadd.f32 0.0, %v799
        %801 = vmatmul.f32.gmra.mxu0 %v714
        %v802 = vpop.f32.mrf.mxu0
        %v803 = vadd.f32 0.0, %v802
        %804 = vmatmul.f32.gmra.mxu0 %v717
        %v805 = vpop.f32.mrf.mxu0
        %v806 = vadd.f32 0.0, %v805
        %807 = vmatmul.f32.gmra.mxu0 %v720
        %v808 = vpop.f32.mrf.mxu0
        %v809 = vadd.f32 0.0, %v808
        %810 = vmatmul.f32.gmra.mxu0 %v723
        %v811 = vpop.f32.mrf.mxu0
        %v812 = vadd.f32 0.0, %v811
        %813 = vmatmul.f32.gmra.mxu0 %v726
        %v814 = vpop.f32.mrf.mxu0
        %v815 = vadd.f32 0.0, %v814
        %816 = vmatmul.f32.gmra.mxu0 %v729
        %v817 = vpop.f32.mrf.mxu0
        %v818 = vadd.f32 0.0, %v817
        %819 = vmatmul.f32.gmra.mxu0 %v732
        %v820 = vpop.f32.mrf.mxu0
        %v821 = vadd.f32 0.0, %v820
        %822 = vmatmul.f32.gmra.mxu0 %v735
        %v823 = vpop.f32.mrf.mxu0
        %v824 = vadd.f32 0.0, %v823
        %825 = vmatmul.f32.gmra.mxu0 %v738
        %v826 = vpop.f32.mrf.mxu0
        %v827 = vadd.f32 0.0, %v826
        %828 = vmatmul.f32.gmra.mxu0 %v741
        %v829 = vpop.f32.mrf.mxu0
        %v830 = vadd.f32 0.0, %v829
        %831 = vmatmul.f32.gmra.mxu0 %v744
        %v832 = vpop.f32.mrf.mxu0
        %v833 = vadd.f32 0.0, %v832
        %834 = vmatmul.f32.gmra.mxu0 %v747
        %v835 = vpop.f32.mrf.mxu0
        %v836 = vadd.f32 0.0, %v835
        %837 = vdwg.mxu0
        %v838 = vsel %vm531, %v791, 0.0
        %v839 = vsel %vm531, %v794, 0.0
        %v840 = vadd.f32 %v838, %v839
        %v841 = vsel %vm531, %v797, 0.0
        %v842 = vadd.f32 %v840, %v841
        %v843 = vsel %vm531, %v800, 0.0
        %v844 = vadd.f32 %v842, %v843
        %v845 = vsel %vm531, %v803, 0.0
        %v846 = vadd.f32 %v844, %v845
        %v847 = vsel %vm531, %v806, 0.0
        %v848 = vadd.f32 %v846, %v847
        %v849 = vsel %vm531, %v809, 0.0
        %v850 = vadd.f32 %v848, %v849
        %v851 = vsel %vm531, %v812, 0.0
        %v852 = vadd.f32 %v850, %v851
        %v853 = vsel %vm531, %v815, 0.0
        %v854 = vadd.f32 %v852, %v853
        %v855 = vsel %vm531, %v818, 0.0
        %v856 = vadd.f32 %v854, %v855
        %v857 = vsel %vm531, %v821, 0.0
        %v858 = vadd.f32 %v856, %v857
        %v859 = vsel %vm531, %v824, 0.0
        %v860 = vadd.f32 %v858, %v859
        %v861 = vsel %vm531, %v827, 0.0
        %v862 = vadd.f32 %v860, %v861
        %v863 = vsel %vm531, %v830, 0.0
        %v864 = vadd.f32 %v862, %v863
        %v865 = vsel %vm531, %v833, 0.0
        %v866 = vadd.f32 %v864, %v865
        %v867 = vsel %vm531, %v836, 0.0
        %v868 = vadd.f32 %v866, %v867
        %v869 = vrot.slane %v868, 4
        %v870 = vadd.f32 %v868, %v869
        %v871 = vrot.slane %v870, 2
        %v872 = vadd.f32 %v870, %v871
        %v873 = vrot.slane %v872, 1
        %v874 = vadd.f32 %v872, %v873
        %v875 = vmul.f32 %v874, 0.0078125
        %v876 = vmul.f32 %v791, %v791
        %v877 = vmul.f32 %v794, %v794
        %v878 = vmul.f32 %v797, %v797
        %v879 = vmul.f32 %v800, %v800
        %v880 = vmul.f32 %v803, %v803
        %v881 = vmul.f32 %v806, %v806
        %v882 = vmul.f32 %v809, %v809
        %v883 = vmul.f32 %v812, %v812
        %v884 = vmul.f32 %v815, %v815
        %v885 = vmul.f32 %v818, %v818
        %v886 = vmul.f32 %v821, %v821
        %v887 = vmul.f32 %v824, %v824
        %v888 = vmul.f32 %v827, %v827
        %v889 = vmul.f32 %v830, %v830
        %v890 = vmul.f32 %v833, %v833
        %v891 = vmul.f32 %v836, %v836
        %v892 = vsel %vm531, %v876, 0.0
        %v893 = vsel %vm531, %v877, 0.0
        %v894 = vadd.f32 %v892, %v893
        %v895 = vsel %vm531, %v878, 0.0
        %v896 = vadd.f32 %v894, %v895
        %v897 = vsel %vm531, %v879, 0.0
        %v898 = vadd.f32 %v896, %v897
        %v899 = vsel %vm531, %v880, 0.0
        %v900 = vadd.f32 %v898, %v899
        %v901 = vsel %vm531, %v881, 0.0
        %v902 = vadd.f32 %v900, %v901
        %v903 = vsel %vm531, %v882, 0.0
        %v904 = vadd.f32 %v902, %v903
        %v905 = vsel %vm531, %v883, 0.0
        %v906 = vadd.f32 %v904, %v905
        %v907 = vsel %vm531, %v884, 0.0
        %v908 = vadd.f32 %v906, %v907
        %v909 = vsel %vm531, %v885, 0.0
        %v910 = vadd.f32 %v908, %v909
        %v911 = vsel %vm531, %v886, 0.0
        %v912 = vadd.f32 %v910, %v911
        %v913 = vsel %vm531, %v887, 0.0
        %v914 = vadd.f32 %v912, %v913
        %v915 = vsel %vm531, %v888, 0.0
        %v916 = vadd.f32 %v914, %v915
        %v917 = vsel %vm531, %v889, 0.0
        %v918 = vadd.f32 %v916, %v917
        %v919 = vsel %vm531, %v890, 0.0
        %v920 = vadd.f32 %v918, %v919
        %v921 = vsel %vm531, %v891, 0.0
        %v922 = vadd.f32 %v920, %v921
        %v923 = vrot.slane %v922, 4
        %v924 = vadd.f32 %v922, %v923
        %v925 = vrot.slane %v924, 2
        %v926 = vadd.f32 %v924, %v925
        %v927 = vrot.slane %v926, 1
        %v928 = vadd.f32 %v926, %v927
        %v929 = vmul.f32 %v928, 0.0078125
        %v930 = vmul.f32 %v875, %v875
        %v931 = vsub.f32 %v929, %v930
        %v932 = vmax.f32 %v931, 0.0
        %v933 = vld [vmem:[%s6] sm:$0x1]
        %v934 = vld [vmem:[%s6 + $0x1] sm:$0x1]
        %v935 = vadd.f32 %v932, 1e-05
        %v936 = vrsqrt.pop %v935
        %v937 = vmul.f32 %v936, %v935
        %v938 = vmul.f32 %v937, %v936
        %v939 = vmul.f32 0.5, %v938
        %v940 = vsub.f32 1.5, %v939
        %v941 = vmul.f32 %v936, %v940
        %vm942 = vweird.f32 %v935
        %vm943 = vweird.f32 %v936
        %vm944 = vmor %vm942, %vm943
        %v945 = vsel %vm944, %v936, %v941
        %v946 = vmul.f32 %v933, %v945
        %v947 = vmul.f32 %v875, %v946
        %v948 = vsub.f32 %v934, %v947
        %v949 = vperm.slane %v946, 0
        %v950 = vmul.f32 %v791, %v949
        %v951 = vmul.f32 %v794, %v949
        %v952 = vmul.f32 %v797, %v949
        %v953 = vmul.f32 %v800, %v949
        %v954 = vmul.f32 %v803, %v949
        %v955 = vmul.f32 %v806, %v949
        %v956 = vmul.f32 %v809, %v949
        %v957 = vmul.f32 %v812, %v949
        %v958 = vmul.f32 %v815, %v949
        %v959 = vmul.f32 %v818, %v949
        %v960 = vmul.f32 %v821, %v949
        %v961 = vmul.f32 %v824, %v949
        %v962 = vmul.f32 %v827, %v949
        %v963 = vmul.f32 %v830, %v949
        %v964 = vmul.f32 %v833, %v949
        %v965 = vmul.f32 %v836, %v949
        %v966 = vperm.slane %v948, 0
        %v967 = vadd.f32 %v950, %v966
        %v968 = vadd.f32 %v951, %v966
        %v969 = vadd.f32 %v952, %v966
        %v970 = vadd.f32 %v953, %v966
        %v971 = vadd.f32 %v954, %v966
        %v972 = vadd.f32 %v955, %v966
        %v973 = vadd.f32 %v956, %v966
        %v974 = vadd.f32 %v957, %v966
        %v975 = vadd.f32 %v958, %v966
        %v976 = vadd.f32 %v959, %v966
        %v977 = vadd.f32 %v960, %v966
        %v978 = vadd.f32 %v961, %v966
        %v979 = vadd.f32 %v962, %v966
        %v980 = vadd.f32 %v963, %v966
        %v981 = vadd.f32 %v964, %v966
        %v982 = vadd.f32 %v965, %v966
        %v983 = vmax.f32 %v967, 0.0
        %v984 = vmax.f32 %v968, 0.0
        %v985 = vmax.f32 %v969, 0.0
        %v986 = vmax.f32 %v970, 0.0
        %v987 = vmax.f32 %v971, 0.0
        %v988 = vmax.f32 %v972, 0.0
        %v989 = vmax.f32 %v973, 0.0
        %v990 = vmax.f32 %v974, 0.0
        %v991 = vmax.f32 %v975, 0.0
        %v992 = vmax.f32 %v976, 0.0
        %v993 = vmax.f32 %v977, 0.0
        %v994 = vmax.f32 %v978, 0.0
        %v995 = vmax.f32 %v979, 0.0
        %v996 = vmax.f32 %v980, 0.0
        %v997 = vmax.f32 %v981, 0.0
        %v998 = vmax.f32 %v982, 0.0
        %v999 = vld [vmem:[%s3] sm:$0xff]
        %v1000 = vld [vmem:[%s3 + $0x8] sm:$0xff]
        %v1001 = vld [vmem:[%s3 + $0x10] sm:$0xff]
        %v1002 = vld [vmem:[%s3 + $0x18] sm:$0xff]
        %v1003 = vld [vmem:[%s3 + $0x20] sm:$0xff]
        %v1004 = vld [vmem:[%s3 + $0x28] sm:$0xff]
        %v1005 = vld [vmem:[%s3 + $0x30] sm:$0xff]
        %v1006 = vld [vmem:[%s3 + $0x38] sm:$0xff]
        %v1007 = vld [vmem:[%s3 + $0x40] sm:$0xff]
        %v1008 = vld [vmem:[%s3 + $0x48] sm:$0xff]
        %v1009 = vld [vmem:[%s3 + $0x50] sm:$0xff]
        %v1010 = vld [vmem:[%s3 + $0x58] sm:$0xff]
        %v1011 = vld [vmem:[%s3 + $0x60] sm:$0xff]
        %v1012 = vld [vmem:[%s3 + $0x68] sm:$0xff]
        %v1013 = vld [vmem:[%s3 + $0x70] sm:$0xff]
        %v1014 = vld [vmem:[%s3 + $0x78] sm:$0xff]
        %v1016 = vsel %vm531, %v983, 0
        %v1019 = vsel %vm531, %v984, 0
        %v1022 = vsel %vm531, %v985, 0
        %v1025 = vsel %vm531, %v986, 0
        %v1028 = vsel %vm531, %v987, 0
        %v1031 = vsel %vm531, %v988, 0
        %v1034 = vsel %vm531, %v989, 0
        %v1037 = vsel %vm531, %v990, 0
        %v1040 = vsel %vm531, %v991, 0
        %v1043 = vsel %vm531, %v992, 0
        %v1046 = vsel %vm531, %v993, 0
        %v1049 = vsel %vm531, %v994, 0
        %v1052 = vsel %vm531, %v995, 0
        %v1055 = vsel %vm531, %v996, 0
        %v1058 = vsel %vm531, %v997, 0
        %v1061 = vsel %vm531, %v998, 0
        %v1064 = vsel %vm531, %v999, 0
        %v1067 = vsel %vm531, %v1000, 0
        %v1070 = vsel %vm531, %v1001, 0
        %v1073 = vsel %vm531, %v1002, 0
        %v1076 = vsel %vm531, %v1003, 0
        %v1079 = vsel %vm531, %v1004, 0
        %v1082 = vsel %vm531, %v1005, 0
        %v1085 = vsel %vm531, %v1006, 0
        %v1088 = vsel %vm531, %v1007, 0
        %v1091 = vsel %vm531, %v1008, 0
        %v1094 = vsel %vm531, %v1009, 0
        %v1097 = vsel %vm531, %v1010, 0
        %v1100 = vsel %vm531, %v1011, 0
        %v1103 = vsel %vm531, %v1012, 0
        %v1106 = vsel %vm531, %v1013, 0
        %v1109 = vsel %vm531, %v1014, 0
        %1111 = vmatpush.xpose.msra.mxu0 %v1109
        %1112 = vmatpush.xpose.msra.mxu0 %v1106
        %1113 = vmatpush.xpose.msra.mxu0 %v1103
        %1114 = vmatpush.xpose.msra.mxu0 %v1100
        %1115 = vmatpush.xpose.msra.mxu0 %v1097
        %1116 = vmatpush.xpose.msra.mxu0 %v1094
        %1117 = vmatpush.xpose.msra.mxu0 %v1091
        %1118 = vmatpush.xpose.msra.mxu0 %v1088
        %1119 = vmatpush.xpose.msra.mxu0 %v1085
        %1120 = vmatpush.xpose.msra.mxu0 %v1082
        %1121 = vmatpush.xpose.msra.mxu0 %v1079
        %1122 = vmatpush.xpose.msra.mxu0 %v1076
        %1123 = vmatpush.xpose.msra.mxu0 %v1073
        %1124 = vmatpush.xpose.msra.mxu0 %v1070
        %1125 = vmatpush.xpose.msra.mxu0 %v1067
        %1126 = vmatpush.xpose.msra.mxu0 %v1064
        %1127 = vmatmul.f32.gmra.mxu0 %v1016
        %v1128 = vpop.f32.mrf.mxu0
        %v1129 = vadd.f32 0.0, %v1128
        %1130 = vmatmul.f32.gmra.mxu0 %v1019
        %v1131 = vpop.f32.mrf.mxu0
        %v1132 = vadd.f32 0.0, %v1131
        %1133 = vmatmul.f32.gmra.mxu0 %v1022
        %v1134 = vpop.f32.mrf.mxu0
        %v1135 = vadd.f32 0.0, %v1134
        %1136 = vmatmul.f32.gmra.mxu0 %v1025
        %v1137 = vpop.f32.mrf.mxu0
        %v1138 = vadd.f32 0.0, %v1137
        %1139 = vmatmul.f32.gmra.mxu0 %v1028
        %v1140 = vpop.f32.mrf.mxu0
        %v1141 = vadd.f32 0.0, %v1140
        %1142 = vmatmul.f32.gmra.mxu0 %v1031
        %v1143 = vpop.f32.mrf.mxu0
        %v1144 = vadd.f32 0.0, %v1143
        %1145 = vmatmul.f32.gmra.mxu0 %v1034
        %v1146 = vpop.f32.mrf.mxu0
        %v1147 = vadd.f32 0.0, %v1146
        %1148 = vmatmul.f32.gmra.mxu0 %v1037
        %v1149 = vpop.f32.mrf.mxu0
        %v1150 = vadd.f32 0.0, %v1149
        %1151 = vmatmul.f32.gmra.mxu0 %v1040
        %v1152 = vpop.f32.mrf.mxu0
        %v1153 = vadd.f32 0.0, %v1152
        %1154 = vmatmul.f32.gmra.mxu0 %v1043
        %v1155 = vpop.f32.mrf.mxu0
        %v1156 = vadd.f32 0.0, %v1155
        %1157 = vmatmul.f32.gmra.mxu0 %v1046
        %v1158 = vpop.f32.mrf.mxu0
        %v1159 = vadd.f32 0.0, %v1158
        %1160 = vmatmul.f32.gmra.mxu0 %v1049
        %v1161 = vpop.f32.mrf.mxu0
        %v1162 = vadd.f32 0.0, %v1161
        %1163 = vmatmul.f32.gmra.mxu0 %v1052
        %v1164 = vpop.f32.mrf.mxu0
        %v1165 = vadd.f32 0.0, %v1164
        %1166 = vmatmul.f32.gmra.mxu0 %v1055
        %v1167 = vpop.f32.mrf.mxu0
        %v1168 = vadd.f32 0.0, %v1167
        %1169 = vmatmul.f32.gmra.mxu0 %v1058
        %v1170 = vpop.f32.mrf.mxu0
        %v1171 = vadd.f32 0.0, %v1170
        %1172 = vmatmul.f32.gmra.mxu0 %v1061
        %v1173 = vpop.f32.mrf.mxu0
        %v1174 = vadd.f32 0.0, %v1173
        %1175 = vdwg.mxu0
        %v1176 = vadd.f32 %v1129, %v1132
        %v1177 = vadd.f32 %v1176, %v1135
        %v1178 = vadd.f32 %v1177, %v1138
        %v1179 = vadd.f32 %v1178, %v1141
        %v1180 = vadd.f32 %v1179, %v1144
        %v1181 = vadd.f32 %v1180, %v1147
        %v1182 = vadd.f32 %v1181, %v1150
        %v1183 = vadd.f32 %v1182, %v1153
        %v1184 = vadd.f32 %v1183, %v1156
        %v1185 = vadd.f32 %v1184, %v1159
        %v1186 = vadd.f32 %v1185, %v1162
        %v1187 = vadd.f32 %v1186, %v1165
        %v1188 = vadd.f32 %v1187, %v1168
        %v1189 = vadd.f32 %v1188, %v1171
        %v1190 = vadd.f32 %v1189, %v1174
        %v1191 = vrot.slane %v1190, 4
        %v1192 = vadd.f32 %v1190, %v1191
        %v1193 = vrot.slane %v1192, 2
        %v1194 = vadd.f32 %v1192, %v1193
        %v1195 = vrot.slane %v1194, 1
        %v1196 = vadd.f32 %v1194, %v1195
        %v1197 = vmul.f32 %v1196, 0.0078125
        %v1198 = vmul.f32 %v1129, %v1129
        %v1199 = vmul.f32 %v1132, %v1132
        %v1200 = vmul.f32 %v1135, %v1135
        %v1201 = vmul.f32 %v1138, %v1138
        %v1202 = vmul.f32 %v1141, %v1141
        %v1203 = vmul.f32 %v1144, %v1144
        %v1204 = vmul.f32 %v1147, %v1147
        %v1205 = vmul.f32 %v1150, %v1150
        %v1206 = vmul.f32 %v1153, %v1153
        %v1207 = vmul.f32 %v1156, %v1156
        %v1208 = vmul.f32 %v1159, %v1159
        %v1209 = vmul.f32 %v1162, %v1162
        %v1210 = vmul.f32 %v1165, %v1165
        %v1211 = vmul.f32 %v1168, %v1168
        %v1212 = vmul.f32 %v1171, %v1171
        %v1213 = vmul.f32 %v1174, %v1174
        %v1214 = vadd.f32 %v1198, %v1199
        %v1215 = vadd.f32 %v1214, %v1200
        %v1216 = vadd.f32 %v1215, %v1201
        %v1217 = vadd.f32 %v1216, %v1202
        %v1218 = vadd.f32 %v1217, %v1203
        %v1219 = vadd.f32 %v1218, %v1204
        %v1220 = vadd.f32 %v1219, %v1205
        %v1221 = vadd.f32 %v1220, %v1206
        %v1222 = vadd.f32 %v1221, %v1207
        %v1223 = vadd.f32 %v1222, %v1208
        %v1224 = vadd.f32 %v1223, %v1209
        %v1225 = vadd.f32 %v1224, %v1210
        %v1226 = vadd.f32 %v1225, %v1211
        %v1227 = vadd.f32 %v1226, %v1212
        %v1228 = vadd.f32 %v1227, %v1213
        %v1229 = vrot.slane %v1228, 4
        %v1230 = vadd.f32 %v1228, %v1229
        %v1231 = vrot.slane %v1230, 2
        %v1232 = vadd.f32 %v1230, %v1231
        %v1233 = vrot.slane %v1232, 1
        %v1234 = vadd.f32 %v1232, %v1233
        %v1235 = vmul.f32 %v1234, 0.0078125
        %v1236 = vmul.f32 %v1197, %v1197
        %v1237 = vsub.f32 %v1235, %v1236
        %v1238 = vmax.f32 %v1237, 0.0
        %v1239 = vld [vmem:[%s7] sm:$0x1]
        %v1240 = vld [vmem:[%s7 + $0x1] sm:$0x1]
        %v1241 = vadd.f32 %v1238, 1e-05
        %v1242 = vrsqrt.pop %v1241
        %v1243 = vmul.f32 %v1242, %v1241
        %v1244 = vmul.f32 %v1243, %v1242
        %v1245 = vmul.f32 0.5, %v1244
        %v1246 = vsub.f32 1.5, %v1245
        %v1247 = vmul.f32 %v1242, %v1246
        %vm1248 = vweird.f32 %v1241
        %vm1249 = vweird.f32 %v1242
        %vm1250 = vmor %vm1248, %vm1249
        %v1251 = vsel %vm1250, %v1242, %v1247
        %v1252 = vmul.f32 %v1239, %v1251
        %v1253 = vmul.f32 %v1197, %v1252
        %v1254 = vsub.f32 %v1240, %v1253
        %v1255 = vperm.slane %v1252, 0
        %v1256 = vmul.f32 %v1129, %v1255
        %v1257 = vmul.f32 %v1132, %v1255
        %v1258 = vmul.f32 %v1135, %v1255
        %v1259 = vmul.f32 %v1138, %v1255
        %v1260 = vmul.f32 %v1141, %v1255
        %v1261 = vmul.f32 %v1144, %v1255
        %v1262 = vmul.f32 %v1147, %v1255
        %v1263 = vmul.f32 %v1150, %v1255
        %v1264 = vmul.f32 %v1153, %v1255
        %v1265 = vmul.f32 %v1156, %v1255
        %v1266 = vmul.f32 %v1159, %v1255
        %v1267 = vmul.f32 %v1162, %v1255
        %v1268 = vmul.f32 %v1165, %v1255
        %v1269 = vmul.f32 %v1168, %v1255
        %v1270 = vmul.f32 %v1171, %v1255
        %v1271 = vmul.f32 %v1174, %v1255
        %v1272 = vperm.slane %v1254, 0
        %v1273 = vadd.f32 %v1256, %v1272
        %v1274 = vadd.f32 %v1257, %v1272
        %v1275 = vadd.f32 %v1258, %v1272
        %v1276 = vadd.f32 %v1259, %v1272
        %v1277 = vadd.f32 %v1260, %v1272
        %v1278 = vadd.f32 %v1261, %v1272
        %v1279 = vadd.f32 %v1262, %v1272
        %v1280 = vadd.f32 %v1263, %v1272
        %v1281 = vadd.f32 %v1264, %v1272
        %v1282 = vadd.f32 %v1265, %v1272
        %v1283 = vadd.f32 %v1266, %v1272
        %v1284 = vadd.f32 %v1267, %v1272
        %v1285 = vadd.f32 %v1268, %v1272
        %v1286 = vadd.f32 %v1269, %v1272
        %v1287 = vadd.f32 %v1270, %v1272
        %v1288 = vadd.f32 %v1271, %v1272
        %v1289 = vmax.f32 %v1273, 0.0
        %v1290 = vmax.f32 %v1274, 0.0
        %v1291 = vmax.f32 %v1275, 0.0
        %v1292 = vmax.f32 %v1276, 0.0
        %v1293 = vmax.f32 %v1277, 0.0
        %v1294 = vmax.f32 %v1278, 0.0
        %v1295 = vmax.f32 %v1279, 0.0
        %v1296 = vmax.f32 %v1280, 0.0
        %v1297 = vmax.f32 %v1281, 0.0
        %v1298 = vmax.f32 %v1282, 0.0
        %v1299 = vmax.f32 %v1283, 0.0
        %v1300 = vmax.f32 %v1284, 0.0
        %v1301 = vmax.f32 %v1285, 0.0
        %v1302 = vmax.f32 %v1286, 0.0
        %v1303 = vmax.f32 %v1287, 0.0
        %v1304 = vmax.f32 %v1288, 0.0
        %v1305 = vld [vmem:[%s4] sm:$0xff]
        %v1306 = vld [vmem:[%s4 + $0x8] sm:$0xff]
        %v1307 = vld [vmem:[%s4 + $0x10] sm:$0xff]
        %v1308 = vld [vmem:[%s4 + $0x18] sm:$0xff]
        %v1309 = vld [vmem:[%s4 + $0x20] sm:$0xff]
        %v1310 = vld [vmem:[%s4 + $0x28] sm:$0xff]
        %v1311 = vld [vmem:[%s4 + $0x30] sm:$0xff]
        %v1312 = vld [vmem:[%s4 + $0x38] sm:$0xff]
        %v1313 = vld [vmem:[%s4 + $0x40] sm:$0xff]
        %v1314 = vld [vmem:[%s4 + $0x48] sm:$0xff]
        %v1315 = vld [vmem:[%s4 + $0x50] sm:$0xff]
        %v1316 = vld [vmem:[%s4 + $0x58] sm:$0xff]
        %v1317 = vld [vmem:[%s4 + $0x60] sm:$0xff]
        %v1318 = vld [vmem:[%s4 + $0x68] sm:$0xff]
        %v1319 = vld [vmem:[%s4 + $0x70] sm:$0xff]
        %v1320 = vld [vmem:[%s4 + $0x78] sm:$0xff]
        %1321 = vmatpush.xpose.msra.mxu0 %v1320
        %1322 = vmatpush.xpose.msra.mxu0 %v1319
        %1323 = vmatpush.xpose.msra.mxu0 %v1318
        %1324 = vmatpush.xpose.msra.mxu0 %v1317
        %1325 = vmatpush.xpose.msra.mxu0 %v1316
        %1326 = vmatpush.xpose.msra.mxu0 %v1315
        %1327 = vmatpush.xpose.msra.mxu0 %v1314
        %1328 = vmatpush.xpose.msra.mxu0 %v1313
        %1329 = vmatpush.xpose.msra.mxu0 %v1312
        %1330 = vmatpush.xpose.msra.mxu0 %v1311
        %1331 = vmatpush.xpose.msra.mxu0 %v1310
        %1332 = vmatpush.xpose.msra.mxu0 %v1309
        %1333 = vmatpush.xpose.msra.mxu0 %v1308
        %1334 = vmatpush.xpose.msra.mxu0 %v1307
        %1335 = vmatpush.xpose.msra.mxu0 %v1306
        %1336 = vmatpush.xpose.msra.mxu0 %v1305
        %1337 = vmatmul.f32.gmra.mxu0 %v1289
        %v1338 = vpop.f32.mrf.mxu0
        %v1339 = vadd.f32 0.0, %v1338
        %1340 = vmatmul.f32.gmra.mxu0 %v1290
        %v1341 = vpop.f32.mrf.mxu0
        %v1342 = vadd.f32 0.0, %v1341
        %1343 = vmatmul.f32.gmra.mxu0 %v1291
        %v1344 = vpop.f32.mrf.mxu0
        %v1345 = vadd.f32 0.0, %v1344
        %1346 = vmatmul.f32.gmra.mxu0 %v1292
        %v1347 = vpop.f32.mrf.mxu0
        %v1348 = vadd.f32 0.0, %v1347
        %1349 = vmatmul.f32.gmra.mxu0 %v1293
        %v1350 = vpop.f32.mrf.mxu0
        %v1351 = vadd.f32 0.0, %v1350
        %1352 = vmatmul.f32.gmra.mxu0 %v1294
        %v1353 = vpop.f32.mrf.mxu0
        %v1354 = vadd.f32 0.0, %v1353
        %1355 = vmatmul.f32.gmra.mxu0 %v1295
        %v1356 = vpop.f32.mrf.mxu0
        %v1357 = vadd.f32 0.0, %v1356
        %1358 = vmatmul.f32.gmra.mxu0 %v1296
        %v1359 = vpop.f32.mrf.mxu0
        %v1360 = vadd.f32 0.0, %v1359
        %1361 = vmatmul.f32.gmra.mxu0 %v1297
        %v1362 = vpop.f32.mrf.mxu0
        %v1363 = vadd.f32 0.0, %v1362
        %1364 = vmatmul.f32.gmra.mxu0 %v1298
        %v1365 = vpop.f32.mrf.mxu0
        %v1366 = vadd.f32 0.0, %v1365
        %1367 = vmatmul.f32.gmra.mxu0 %v1299
        %v1368 = vpop.f32.mrf.mxu0
        %v1369 = vadd.f32 0.0, %v1368
        %1370 = vmatmul.f32.gmra.mxu0 %v1300
        %v1371 = vpop.f32.mrf.mxu0
        %v1372 = vadd.f32 0.0, %v1371
        %1373 = vmatmul.f32.gmra.mxu0 %v1301
        %v1374 = vpop.f32.mrf.mxu0
        %v1375 = vadd.f32 0.0, %v1374
        %1376 = vmatmul.f32.gmra.mxu0 %v1302
        %v1377 = vpop.f32.mrf.mxu0
        %v1378 = vadd.f32 0.0, %v1377
        %1379 = vmatmul.f32.gmra.mxu0 %v1303
        %v1380 = vpop.f32.mrf.mxu0
        %v1381 = vadd.f32 0.0, %v1380
        %1382 = vmatmul.f32.gmra.mxu0 %v1304
        %v1383 = vpop.f32.mrf.mxu0
        %v1384 = vadd.f32 0.0, %v1383
        %1385 = vdwg.mxu0
        %v1386 = vadd.f32 %v1339, %v1342
        %v1387 = vadd.f32 %v1386, %v1345
        %v1388 = vadd.f32 %v1387, %v1348
        %v1389 = vadd.f32 %v1388, %v1351
        %v1390 = vadd.f32 %v1389, %v1354
        %v1391 = vadd.f32 %v1390, %v1357
        %v1392 = vadd.f32 %v1391, %v1360
        %v1393 = vadd.f32 %v1392, %v1363
        %v1394 = vadd.f32 %v1393, %v1366
        %v1395 = vadd.f32 %v1394, %v1369
        %v1396 = vadd.f32 %v1395, %v1372
        %v1397 = vadd.f32 %v1396, %v1375
        %v1398 = vadd.f32 %v1397, %v1378
        %v1399 = vadd.f32 %v1398, %v1381
        %v1400 = vadd.f32 %v1399, %v1384
        %v1401 = vrot.slane %v1400, 4
        %v1402 = vadd.f32 %v1400, %v1401
        %v1403 = vrot.slane %v1402, 2
        %v1404 = vadd.f32 %v1402, %v1403
        %v1405 = vrot.slane %v1404, 1
        %v1406 = vadd.f32 %v1404, %v1405
        %v1407 = vmul.f32 %v1406, 0.0078125
        %v1408 = vmul.f32 %v1339, %v1339
        %v1409 = vmul.f32 %v1342, %v1342
        %v1410 = vmul.f32 %v1345, %v1345
        %v1411 = vmul.f32 %v1348, %v1348
        %v1412 = vmul.f32 %v1351, %v1351
        %v1413 = vmul.f32 %v1354, %v1354
        %v1414 = vmul.f32 %v1357, %v1357
        %v1415 = vmul.f32 %v1360, %v1360
        %v1416 = vmul.f32 %v1363, %v1363
        %v1417 = vmul.f32 %v1366, %v1366
        %v1418 = vmul.f32 %v1369, %v1369
        %v1419 = vmul.f32 %v1372, %v1372
        %v1420 = vmul.f32 %v1375, %v1375
        %v1421 = vmul.f32 %v1378, %v1378
        %v1422 = vmul.f32 %v1381, %v1381
        %v1423 = vmul.f32 %v1384, %v1384
        %v1424 = vadd.f32 %v1408, %v1409
        %v1425 = vadd.f32 %v1424, %v1410
        %v1426 = vadd.f32 %v1425, %v1411
        %v1427 = vadd.f32 %v1426, %v1412
        %v1428 = vadd.f32 %v1427, %v1413
        %v1429 = vadd.f32 %v1428, %v1414
        %v1430 = vadd.f32 %v1429, %v1415
        %v1431 = vadd.f32 %v1430, %v1416
        %v1432 = vadd.f32 %v1431, %v1417
        %v1433 = vadd.f32 %v1432, %v1418
        %v1434 = vadd.f32 %v1433, %v1419
        %v1435 = vadd.f32 %v1434, %v1420
        %v1436 = vadd.f32 %v1435, %v1421
        %v1437 = vadd.f32 %v1436, %v1422
        %v1438 = vadd.f32 %v1437, %v1423
        %v1439 = vrot.slane %v1438, 4
        %v1440 = vadd.f32 %v1438, %v1439
        %v1441 = vrot.slane %v1440, 2
        %v1442 = vadd.f32 %v1440, %v1441
        %v1443 = vrot.slane %v1442, 1
        %v1444 = vadd.f32 %v1442, %v1443
        %v1445 = vmul.f32 %v1444, 0.0078125
        %v1446 = vmul.f32 %v1407, %v1407
        %v1447 = vsub.f32 %v1445, %v1446
        %v1448 = vmax.f32 %v1447, 0.0
        %v1449 = vld [vmem:[%s8] sm:$0x1]
        %v1450 = vld [vmem:[%s8 + $0x1] sm:$0x1]
        %v1451 = vadd.f32 %v1448, 1e-05
        %v1452 = vrsqrt.pop %v1451
        %v1453 = vmul.f32 %v1452, %v1451
        %v1454 = vmul.f32 %v1453, %v1452
        %v1455 = vmul.f32 0.5, %v1454
        %v1456 = vsub.f32 1.5, %v1455
        %v1457 = vmul.f32 %v1452, %v1456
        %vm1458 = vweird.f32 %v1451
        %vm1459 = vweird.f32 %v1452
        %vm1460 = vmor %vm1458, %vm1459
        %v1461 = vsel %vm1460, %v1452, %v1457
        %v1462 = vmul.f32 %v1449, %v1461
        %v1463 = vmul.f32 %v1407, %v1462
        %v1464 = vsub.f32 %v1450, %v1463
        %v1465 = vperm.slane %v1462, 0
        %v1466 = vmul.f32 %v1339, %v1465
        %v1467 = vmul.f32 %v1342, %v1465
        %v1468 = vmul.f32 %v1345, %v1465
        %v1469 = vmul.f32 %v1348, %v1465
        %v1470 = vmul.f32 %v1351, %v1465
        %v1471 = vmul.f32 %v1354, %v1465
        %v1472 = vmul.f32 %v1357, %v1465
        %v1473 = vmul.f32 %v1360, %v1465
        %v1474 = vmul.f32 %v1363, %v1465
        %v1475 = vmul.f32 %v1366, %v1465
        %v1476 = vmul.f32 %v1369, %v1465
        %v1477 = vmul.f32 %v1372, %v1465
        %v1478 = vmul.f32 %v1375, %v1465
        %v1479 = vmul.f32 %v1378, %v1465
        %v1480 = vmul.f32 %v1381, %v1465
        %v1481 = vmul.f32 %v1384, %v1465
        %v1482 = vperm.slane %v1464, 0
        %v1483 = vadd.f32 %v1466, %v1482
        %v1484 = vadd.f32 %v1467, %v1482
        %v1485 = vadd.f32 %v1468, %v1482
        %v1486 = vadd.f32 %v1469, %v1482
        %v1487 = vadd.f32 %v1470, %v1482
        %v1488 = vadd.f32 %v1471, %v1482
        %v1489 = vadd.f32 %v1472, %v1482
        %v1490 = vadd.f32 %v1473, %v1482
        %v1491 = vadd.f32 %v1474, %v1482
        %v1492 = vadd.f32 %v1475, %v1482
        %v1493 = vadd.f32 %v1476, %v1482
        %v1494 = vadd.f32 %v1477, %v1482
        %v1495 = vadd.f32 %v1478, %v1482
        %v1496 = vadd.f32 %v1479, %v1482
        %v1497 = vadd.f32 %v1480, %v1482
        %v1498 = vadd.f32 %v1481, %v1482
        %v1499 = vmax.f32 %v1483, 0.0
        %v1500 = vmax.f32 %v1484, 0.0
        %v1501 = vmax.f32 %v1485, 0.0
        %v1502 = vmax.f32 %v1486, 0.0
        %v1503 = vmax.f32 %v1487, 0.0
        %v1504 = vmax.f32 %v1488, 0.0
        %v1505 = vmax.f32 %v1489, 0.0
        %v1506 = vmax.f32 %v1490, 0.0
        %v1507 = vmax.f32 %v1491, 0.0
        %v1508 = vmax.f32 %v1492, 0.0
        %v1509 = vmax.f32 %v1493, 0.0
        %v1510 = vmax.f32 %v1494, 0.0
        %v1511 = vmax.f32 %v1495, 0.0
        %v1512 = vmax.f32 %v1496, 0.0
        %v1513 = vmax.f32 %v1497, 0.0
        %v1514 = vmax.f32 %v1498, 0.0
        %1515 = vst [vmem:[%s356] sm:$0xff] %v1499
        %1516 = vst [vmem:[%s356 + $0x8] sm:$0xff] %v1500
        %1517 = vst [vmem:[%s356 + $0x10] sm:$0xff] %v1501
        %1518 = vst [vmem:[%s356 + $0x18] sm:$0xff] %v1502
        %1519 = vst [vmem:[%s356 + $0x20] sm:$0xff] %v1503
        %1520 = vst [vmem:[%s356 + $0x28] sm:$0xff] %v1504
        %1521 = vst [vmem:[%s356 + $0x30] sm:$0xff] %v1505
        %1522 = vst [vmem:[%s356 + $0x38] sm:$0xff] %v1506
        %1523 = vst [vmem:[%s356 + $0x40] sm:$0xff] %v1507
        %1524 = vst [vmem:[%s356 + $0x48] sm:$0xff] %v1508
        %1525 = vst [vmem:[%s356 + $0x50] sm:$0xff] %v1509
        %1526 = vst [vmem:[%s356 + $0x58] sm:$0xff] %v1510
        %1527 = vst [vmem:[%s356 + $0x60] sm:$0xff] %v1511
        %1528 = vst [vmem:[%s356 + $0x68] sm:$0xff] %v1512
        %1529 = vst [vmem:[%s356 + $0x70] sm:$0xff] %v1513
        %1530 = vst [vmem:[%s356 + $0x78] sm:$0xff] %v1514
        %v1531 = vmax.f32 %v1499, %v1501
        %v1532 = vmax.f32 %v1500, %v1502
        %v1533 = vmax.f32 %v1531, %v1503
        %v1534 = vmax.f32 %v1532, %v1504
        %v1535 = vmax.f32 %v1533, %v1505
        %v1536 = vmax.f32 %v1534, %v1506
        %v1537 = vmax.f32 %v1535, %v1536
        %v1538 = vrot.slane %v1537, 4
        %v1539 = vmax.f32 %v1537, %v1538
        %v1540 = vrot.slane %v1539, 2
        %v1541 = vmax.f32 %v1539, %v1540
        %v1542 = vrot.slane %v1541, 1
        %v1543 = vmax.f32 %v1541, %v1542
        %v1544 = vmax.f32 %v1507, %v1509
        %v1545 = vmax.f32 %v1508, %v1510
        %v1546 = vmax.f32 %v1544, %v1511
        %v1547 = vmax.f32 %v1545, %v1512
        %v1548 = vmax.f32 %v1546, %v1513
        %v1549 = vmax.f32 %v1547, %v1514
        %v1550 = vmax.f32 %v1548, %v1549
        %v1551 = vrot.slane %v1550, 4
        %v1552 = vmax.f32 %v1550, %v1551
        %v1553 = vrot.slane %v1552, 2
        %v1554 = vmax.f32 %v1552, %v1553
        %v1555 = vrot.slane %v1554, 1
        %v1556 = vmax.f32 %v1554, %v1555
        %vm1559 = vcmask 1041409
        %v1560 = vsel %vm1559, %v1556, %v1543
        %1562 = vst [vmem:[%s363] sm:$0x3] %v1560
        %s1563 = sand.u32 %s230, 1
        %s1564 = scalar_lea.sflag [#allocation3], %s1563
        %s1565 = sand.u32 %s230, 1
        %s1566 = smul.addr %s1565, 128
        %s1567 = scalar_lea.vmem [#allocation2], %s1566
        %s1568 = sand.u32 %s256, 1
        %s1569 = scalar_lea.sflag [#allocation5], %s1568
        %s1570 = sand.u32 %s256, 1
        %s1571 = smul.addr %s1570, 2
        %s1572 = scalar_lea.vmem [#allocation4], %s1571
        // Predicated region
        $region57: #{tpu_custom_call.1} parent=55 // pred_check
          %p1573 = pneg %p240
        $region58: #{tpu_custom_call.1} parent=55 // pred_check_branch
          %1575 = sbr.rel (%p1573) target = $region60
        $region59: #{tpu_custom_call.1} parent=55 // pred_region
          %1577 = vsyncadd %s1564, 0
          %s1578 = smul.addr %s28, 16
          %s1579 = smul.addr %s1578, 8
          %s1580 = scalar_lea.hbm %s9, %s1579
          %s1581 = sshll.u32 %s1567, 4
          %s1582 = int_to_ptr.vmem [resolvable:$true] %s1581
          %s1583 = sshll.u32 %s1580, 4
          %s1584 = int_to_ptr.hbm [resolvable:$true] %s1583
          %1589 = dma.vmem_to_hbm [thread:$0]  %s1582, 2048, %s1584, %s1564, 128, 128, 8
        $region60: #{tpu_custom_call.1} parent=55 // pred_fallthru
          _
        // Predicated region
        $region61: #{tpu_custom_call.1} parent=55 // pred_check
          %p1590 = pneg %p266
        $region62: #{tpu_custom_call.1} parent=55 // pred_check_branch
          %1592 = sbr.rel (%p1590) target = $region64
        $region63: #{tpu_custom_call.1} parent=55 // pred_region
          %1594 = vsyncadd %s1569, 0
          %s1595 = smul.addr %s28, 2
          %s1596 = scalar_lea.hbm %s10, %s1595
          %s1598 = sshll.u32 %s1572, 4
          %s1599 = int_to_ptr.vmem [resolvable:$true] %s1598
          %s1600 = sshll.u32 %s1596, 4
          %s1601 = int_to_ptr.hbm [resolvable:$true] %s1600
          %1603 = dma.vmem_to_hbm [thread:$0]  %s1599, 32, %s1601, %s1569
        $region64: #{tpu_custom_call.1} parent=55 // pred_fallthru
          _
      $region56: #{tpu_custom_call.1} parent=5 // pred_fallthru
        _
      %p1604 = scmp.le.s32.totalorder 2, %s23
      // Predicated region
      $region65: #{tpu_custom_call.1} parent=5 // pred_check
        %p1605 = pneg %p1604
      $region66: #{tpu_custom_call.1} parent=5 // pred_check_branch
        %1607 = sbr.rel (%p1605) target = $region68
      $region67: #{tpu_custom_call.1} parent=5 // pred_region
        %s1608 = ssub.s32 %s23, 2
        // Predicated region
        $region69: #{tpu_custom_call.1} parent=67 // pred_check
          %p1609 = pneg %p246
        $region70: #{tpu_custom_call.1} parent=67 // pred_check_branch
          %1611 = sbr.rel (%p1609) target = $region72
        $region71: #{tpu_custom_call.1} parent=67 // pred_region
          %s1612 = sand.u32 %s231, 1
          %s1613 = scalar_lea.sflag [#allocation3], %s1612
          %s1614 = sand.u32 %s231, 1
          %s1615 = smul.addr %s1614, 128
          %s1616 = scalar_lea.vmem [#allocation2], %s1615
          %1618 = dma.done %s1613, 2048
        $region72: #{tpu_custom_call.1} parent=67 // pred_fallthru
          _
        // Predicated region
        $region73: #{tpu_custom_call.1} parent=67 // pred_check
          %p1619 = pneg %p272
        $region74: #{tpu_custom_call.1} parent=67 // pred_check_branch
          %1621 = sbr.rel (%p1619) target = $region76
        $region75: #{tpu_custom_call.1} parent=67 // pred_region
          %s1622 = sand.u32 %s257, 1
          %s1623 = scalar_lea.sflag [#allocation5], %s1622
          %s1624 = sand.u32 %s257, 1
          %s1625 = smul.addr %s1624, 2
          %s1626 = scalar_lea.vmem [#allocation4], %s1625
          %1628 = dma.done %s1623, 32
        $region76: #{tpu_custom_call.1} parent=67 // pred_fallthru
          _
      $region68: #{tpu_custom_call.1} parent=5 // pred_fallthru
        _
    $region6: #{tpu_custom_call.1} parent=1 // loop_footer
      %s27 = sadd.s32 1, %s23
    $region7: #{tpu_custom_call.1} parent=1 // loop_footer_branch
      %22 = sbr.rel target = $region3
    $region8: #{tpu_custom_call.1} parent=1 // loop_exit
      _
    %1629 = vsyncpa [#allocation3], 1
    %s1630 = scalar_lea.sflag [#allocation3], 1
    %1631 = vsyncpa %s1630, 1
    %1632 = vsyncpa [#allocation5], 1
    %s1633 = scalar_lea.sflag [#allocation5], 1
    %1634 = vsyncpa %s1633, 1

</llo_original>
